<compile_context>
chip_gen: v7x
topology: tpu7x:2x2x1
jax: 0.10.0
libtpu: 0.0.40
codegen_flags: <defaults>
</compile_context>

<pallas_src>
import functools

import jax
import jax.numpy as jnp
from jax.experimental import pallas as pl
from jax.experimental.pallas import tpu as pltpu


def _round_up(x, m):
    return ((x + m - 1) // m) * m


def _backbone_kernel(hist_ref, wf_ref, b1_ref, w2_ref, b2_ref, o_ref, acc_ref,
                     *, inv_s):
    # hist_ref: (tm, tV)   bf16  token-count histogram tile (exact integer counts)
    # wf_ref  : (tV, C)    bf16  fused weight tile (rows of emb @ W1)
    # b1_ref  : (1, C)     f32
    # w2_ref  : (C, Opad)  bf16
    # b2_ref  : (1, Opad)  f32
    # o_ref   : (tm, Opad) bf16  lane-dense output slab
    # acc_ref : (tm, C)    f32   accumulator across the vocab-reduction axis
    k = pl.program_id(1)

    @pl.when(k == 0)
    def _():
        acc_ref[...] = jnp.zeros_like(acc_ref)

    # Fused embedding-gather + mean-pool + Linear1 on the MXU.
    acc_ref[...] += jnp.dot(hist_ref[...], wf_ref[...],
                            preferred_element_type=jnp.float32)

    @pl.when(k == pl.num_programs(1) - 1)
    def _():
        h = acc_ref[...] * inv_s + b1_ref[...]       # 1/S on the f32 accumulator
        h = jnp.maximum(h, 0.0)                      # ReLU
        out = jnp.dot(h.astype(jnp.bfloat16), w2_ref[...],
                      preferred_element_type=jnp.float32) + b2_ref[...]
        o_ref[...] = out.astype(o_ref.dtype)


def _vmem_limit_bytes():
    # ~48 MiB on v7x (64 MiB physical), ~96 MiB on v5e/v6e (128 MiB physical).
    try:
        cap = pltpu.get_tpu_info().vmem_capacity_bytes
    except Exception:
        cap = 64 * 1024 * 1024
    return min(int(cap * 3 // 4), 100 * 1024 * 1024)


def _run_backbone(hist, wf, b1, w2, b2, *, seq_len, m_tile=512, v_tile=2048):
    """hist: (M, V_pad) bf16 integer counts.  Returns (M, out_dim) f32."""
    M, V_pad = hist.shape
    C = wf.shape[1]
    O = w2.shape[1]

    # Lane-dense output: pad output features to a multiple of 128 with zero
    # weight/bias columns; sliced back after the call.
    O_pad = max(128, _round_up(O, 128))
    if O_pad != O:
        w2 = jnp.pad(w2, ((0, 0), (0, O_pad - O)))
        b2 = jnp.pad(b2, ((0, 0), (0, O_pad - O)))

    # Batch tiling: multiples of 16 (bf16 sublane packing); at least two grid
    # steps when the batch allows so both v7x TensorCores get work.
    tm_full = _round_up(M, 16)
    tm = min(m_tile, max(16, _round_up(tm_full // 2, 16)))
    M_pad = _round_up(M, tm)
    if M_pad != M:
        hist = jnp.pad(hist, ((0, M_pad - M), (0, 0)))

    # Vocab-reduction tiling keeps VMEM bounded independent of vocab size.
    tV = min(v_tile, V_pad)
    if V_pad % tV:
        pad_v = _round_up(V_pad, tV) - V_pad
        hist = jnp.pad(hist, ((0, 0), (0, pad_v)))
        wf = jnp.pad(wf, ((0, pad_v), (0, 0)))
        V_pad += pad_v
    n_k = V_pad // tV
    grid = (M_pad // tm, n_k)

    def _specs(single_buffer_invariants):
        inv = pl.Buffered(1) if single_buffer_invariants else None
        wf_mode = inv if n_k == 1 else None   # wf streams along k when tiled

        def bs(shape, imap, mode):
            if mode is None:
                return pl.BlockSpec(shape, imap)
            return pl.BlockSpec(shape, imap, pipeline_mode=mode)

        return [
            pl.BlockSpec((tm, tV), lambda i, k: (i, k)),   # histogram tile
            bs((tV, C), lambda i, k: (k, 0), wf_mode),     # fused emb@W1 tile
            bs((1, C), lambda i, k: (0, 0), inv),
            bs((C, O_pad), lambda i, k: (0, 0), inv),
            bs((1, O_pad), lambda i, k: (0, 0), inv),
        ]

    def _call(single_buffer_invariants):
        return pl.pallas_call(
            functools.partial(_backbone_kernel, inv_s=1.0 / float(seq_len)),
            out_shape=jax.ShapeDtypeStruct((M_pad, O_pad), jnp.bfloat16),
            grid=grid,
            in_specs=_specs(single_buffer_invariants),
            out_specs=pl.BlockSpec((tm, O_pad), lambda i, k: (i, 0)),
            scratch_shapes=[pltpu.VMEM((tm, C), jnp.float32)],
            compiler_params=pltpu.CompilerParams(
                dimension_semantics=("parallel", "arbitrary"),
                vmem_limit_bytes=_vmem_limit_bytes()),
        )(hist, wf, b1, w2, b2)

    try:
        # Grid-invariant operands single-buffered (halves resident-weight VMEM).
        out = _call(True)
    except Exception:
        # Fall back to default double-buffering if Buffered(1) is unsupported.
        out = _call(False)

    return out[:M, :O].astype(jnp.float32)


def _token_histogram(tokens, v_pad):
    """tokens: (M, S) int32 -> (M, v_pad) f32 counts via scatter-add (O(M*S))."""
    M = tokens.shape[0]
    hist = jnp.zeros((M, v_pad), jnp.float32)
    return hist.at[jnp.arange(M)[:, None], tokens].add(1.0)


def init_params(key, *, txt_vocab_size, txt_dim, compact_dim, output_dim):
    k_emb, k_w1, k_w2 = jax.random.split(key, 3)
    return {
        # bf16 storage for MXU operands; biases stay f32 (added on the f32 acc).
        "embedding": (jax.random.normal(k_emb, (txt_vocab_size, txt_dim),
                                        jnp.float32) * 0.02).astype(jnp.bfloat16),
        "w1": (jax.random.normal(k_w1, (txt_dim, compact_dim), jnp.float32)
               * (1.0 / jnp.sqrt(txt_dim))).astype(jnp.bfloat16),
        "b1": jnp.zeros((1, compact_dim), jnp.float32),
        "w2": (jax.random.normal(k_w2, (compact_dim, output_dim), jnp.float32)
               * (1.0 / jnp.sqrt(compact_dim))).astype(jnp.bfloat16),
        "b2": jnp.zeros((1, output_dim), jnp.float32),
    }


def single_syn_forward(params, query_text, pos_text, neg_text,
                       query_image_set=None, pos_image_set=None,
                       neg_image_set=None, *, v_tile=2048):
    """Returns (query_feat, pos_feat, neg_feat), each (B, output_dim) f32."""
    emb = params["embedding"]
    vocab = emb.shape[0]
    B, S = query_text.shape

    # Fold the embedding into Linear1 at trace time (both are linear):
    #   mean_pool(emb[tokens]) @ W1 == (hist / S) @ (emb @ W1)
    wf = emb.astype(jnp.float32) @ params["w1"].astype(jnp.float32)   # (V, C)
    v_pad = _round_up(vocab, 128)            # lane-dense contraction dimension
    wf = jnp.pad(wf, ((0, v_pad - vocab), (0, 0))).astype(jnp.bfloat16)

    tokens_all = jnp.concatenate([query_text, pos_text, neg_text], axis=0)
    # Exact integer counts (bf16-exact for S <= 256); the 1/S mean scale is
    # applied on the f32 accumulator inside the kernel.
    hist = _token_histogram(tokens_all, v_pad).astype(jnp.bfloat16)

    out = _run_backbone(hist, wf, params["b1"], params["w2"], params["b2"],
                        seq_len=S, v_tile=v_tile)         # (3B, output_dim)
    out = out.reshape(3, B, -1)
    return out[0], out[1], out[2]


if __name__ == "__main__":
    # Small, shape-consistent config (reference forward uses B x 100 tokens and
    # B x 50 x 2048 image sets; image sets are unused for model_type='text').
    B, S = 12, 16
    txt_vocab_size = 384        # with v_tile=128 the demo runs 3 reduction steps
    txt_dim = 128
    compact_dim = 128
    output_dim = 64
    img_dim = 2048

    key = jax.random.PRNGKey(0)
    k_params, k_q, k_p, k_n, k_img = jax.random.split(key, 5)

    params = init_params(k_params, txt_vocab_size=txt_vocab_size,
                         txt_dim=txt_dim, compact_dim=compact_dim,
                         output_dim=output_dim)

    query_text = jax.random.randint(k_q, (B, S), 0, txt_vocab_size, jnp.int32)
    pos_text = jax.random.randint(k_p, (B, S), 0, txt_vocab_size, jnp.int32)
    neg_text = jax.random.randint(k_n, (B, S), 0, txt_vocab_size, jnp.int32)
    # image sets are accepted but unused by the text backbone
    query_image_set = jax.random.normal(k_img, (B, 50, img_dim), jnp.float32)
    pos_image_set = query_image_set
    neg_image_set = query_image_set

    # v_tile=128 so the small demo also exercises the vocab-reduction grid axis
    # (2 batch tiles x 3 vocab tiles); production default is 2048.
    q_feat, p_feat, n_feat = single_syn_forward(
        params, query_text, pos_text, neg_text,
        query_image_set, pos_image_set, neg_image_set, v_tile=128)
    jax.block_until_ready((q_feat, p_feat, n_feat))

    # sanity check against a pure-JAX reference (same bf16 params, f32 math)
    def ref_instance(tokens):
        emb_f32 = params["embedding"].astype(jnp.float32)
        x = emb_f32[tokens].mean(axis=1)
        h = jnp.maximum(x @ params["w1"].astype(jnp.float32) + params["b1"], 0.0)
        return h @ params["w2"].astype(jnp.float32) + params["b2"]

    assert q_feat.shape == (B, output_dim)
    assert p_feat.shape == (B, output_dim)
    assert n_feat.shape == (B, output_dim)
    assert jnp.allclose(q_feat, ref_instance(query_text), atol=2e-3)
    assert jnp.allclose(p_feat, ref_instance(pos_text), atol=2e-3)
    assert jnp.allclose(n_feat, ref_instance(neg_text), atol=2e-3)

    print("KERNEL_OK")
</pallas_src>

<mosaic_0001>
module attributes {stable_mosaic.version = 11 : i64} {
  func.func @_backbone_kernel(%arg0: i32, %arg1: i32, %arg2: memref<32x128xbf16, #tpu.memory_space<vmem>>, %arg3: memref<128x128xbf16, #tpu.memory_space<vmem>>, %arg4: memref<1x128xf32, #tpu.memory_space<vmem>>, %arg5: memref<128x128xbf16, #tpu.memory_space<vmem>>, %arg6: memref<1x128xf32, #tpu.memory_space<vmem>>, %arg7: memref<32x128xbf16, #tpu.memory_space<vmem>>, %arg8: memref<32x128xf32, #tpu.memory_space<vmem>>) attributes {dimension_semantics = [#tpu.dimension_semantics<parallel>, #tpu.dimension_semantics<arbitrary>], iteration_bounds = array<i64: 2, 3>, scalar_prefetch = 0 : i64, scratch_operands = 1 : i64, tpu.core_type = #tpu.core_type<tc>, window_params = [{transform_indices = @transform_0, window_bounds = array<i64: 32, 128>}, {transform_indices = @transform_1, window_bounds = array<i64: 128, 128>}, {pipeline_mode = #tpu.pipeline_mode<synchronous>, transform_indices = @transform_2, window_bounds = array<i64: 1, 128>}, {pipeline_mode = #tpu.pipeline_mode<synchronous>, transform_indices = @transform_3, window_bounds = array<i64: 128, 128>}, {pipeline_mode = #tpu.pipeline_mode<synchronous>, transform_indices = @transform_4, window_bounds = array<i64: 1, 128>}, {transform_indices = @transform_5, window_bounds = array<i64: 32, 128>}]} {
    %c0_i32 = arith.constant 0 : i32
    %0 = arith.cmpi eq, %arg1, %c0_i32 : i32
    %1 = arith.extui %0 : i1 to i32
    %c0_i32_0 = arith.constant 0 : i32
    %2 = arith.cmpi ne, %1, %c0_i32_0 : i32
    scf.if %2 {
      %cst_9 = arith.constant 0.000000e+00 : f32
      %12 = vector.broadcast %cst_9 : f32 to vector<32x128xf32>
      %c0_10 = arith.constant 0 : index
      %c0_11 = arith.constant 0 : index
      %13 = vector.load %arg8[%c0_10, %c0_11] : memref<32x128xf32, #tpu.memory_space<vmem>>, vector<32x128xf32>
      tpu.vector_store %arg8[%c0_10, %c0_11], %12 {strides = array<i32>} : memref<32x128xf32, #tpu.memory_space<vmem>>, vector<32x128xf32>,
    } else {
    }
    %c0 = arith.constant 0 : index
    %c0_1 = arith.constant 0 : index
    %3 = vector.load %arg8[%c0, %c0_1] : memref<32x128xf32, #tpu.memory_space<vmem>>, vector<32x128xf32>
    %c0_2 = arith.constant 0 : index
    %c0_3 = arith.constant 0 : index
    %4 = vector.load %arg2[%c0_2, %c0_3] : memref<32x128xbf16, #tpu.memory_space<vmem>>, vector<32x128xbf16>
    %c0_4 = arith.constant 0 : index
    %c0_5 = arith.constant 0 : index
    %5 = vector.load %arg3[%c0_4, %c0_5] : memref<128x128xbf16, #tpu.memory_space<vmem>>, vector<128x128xbf16>
    %cst = arith.constant dense<0.000000e+00> : vector<32x128xf32>
    %6 = tpu.matmul %4, %5, %cst {dimension_numbers = #tpu.dot_dimension_numbers<[1], [0], [0], [1], [0, 0, 1, 1], [], []>} : vector<32x128xbf16>, vector<128x128xbf16>, vector<32x128xf32> -> vector<32x128xf32>
    %7 = arith.addf %3, %6 : vector<32x128xf32>
    %c0_6 = arith.constant 0 : index
    %c0_7 = arith.constant 0 : index
    %8 = vector.load %arg8[%c0_6, %c0_7] : memref<32x128xf32, #tpu.memory_space<vmem>>, vector<32x128xf32>
    tpu.vector_store %arg8[%c0_6, %c0_7], %7 {strides = array<i32>} : memref<32x128xf32, #tpu.memory_space<vmem>>, vector<32x128xf32>,
    %c2_i32 = arith.constant 2 : i32
    %9 = arith.cmpi eq, %arg1, %c2_i32 : i32
    %10 = arith.extui %9 : i1 to i32
    %c0_i32_8 = arith.constant 0 : i32
    %11 = arith.cmpi ne, %10, %c0_i32_8 : i32
    scf.if %11 {
      %c0_9 = arith.constant 0 : index
      %c0_10 = arith.constant 0 : index
      %12 = vector.load %arg8[%c0_9, %c0_10] : memref<32x128xf32, #tpu.memory_space<vmem>>, vector<32x128xf32>
      %cst_11 = arith.constant 6.250000e-02 : f32
      %13 = vector.broadcast %cst_11 : f32 to vector<32x128xf32>
      %14 = arith.mulf %12, %13 : vector<32x128xf32>
      %c0_12 = arith.constant 0 : index
      %c0_13 = arith.constant 0 : index
      %15 = vector.load %arg4[%c0_12, %c0_13] : memref<1x128xf32, #tpu.memory_space<vmem>>, vector<1x128xf32>
      %16 = vector.broadcast %15 : vector<1x128xf32> to vector<32x128xf32>
      %17 = arith.addf %14, %16 : vector<32x128xf32>
      %cst_14 = arith.constant 0.000000e+00 : f32
      %18 = vector.broadcast %cst_14 : f32 to vector<32x128xf32>
      %19 = arith.maximumf %17, %18 : vector<32x128xf32>
      %20 = arith.truncf %19 : vector<32x128xf32> to vector<32x128xbf16>
      %c0_15 = arith.constant 0 : index
      %c0_16 = arith.constant 0 : index
      %21 = vector.load %arg5[%c0_15, %c0_16] : memref<128x128xbf16, #tpu.memory_space<vmem>>, vector<128x128xbf16>
      %cst_17 = arith.constant dense<0.000000e+00> : vector<32x128xf32>
      %22 = tpu.matmul %20, %21, %cst_17 {dimension_numbers = #tpu.dot_dimension_numbers<[1], [0], [0], [1], [0, 0, 1, 1], [], []>} : vector<32x128xbf16>, vector<128x128xbf16>, vector<32x128xf32> -> vector<32x128xf32>
      %c0_18 = arith.constant 0 : index
      %c0_19 = arith.constant 0 : index
      %23 = vector.load %arg6[%c0_18, %c0_19] : memref<1x128xf32, #tpu.memory_space<vmem>>, vector<1x128xf32>
      %24 = vector.broadcast %23 : vector<1x128xf32> to vector<32x128xf32>
      %25 = arith.addf %22, %24 : vector<32x128xf32>
      %26 = arith.truncf %25 : vector<32x128xf32> to vector<32x128xbf16>
      %c0_20 = arith.constant 0 : index
      %c0_21 = arith.constant 0 : index
      %27 = vector.load %arg7[%c0_20, %c0_21] : memref<32x128xbf16, #tpu.memory_space<vmem>>, vector<32x128xbf16>
      tpu.vector_store %arg7[%c0_20, %c0_21], %26 {strides = array<i32>} : memref<32x128xbf16, #tpu.memory_space<vmem>>, vector<32x128xbf16>,
    } else {
    }
    return
  }
  func.func @transform_0(%arg0: i32, %arg1: i32) -> (i32, i32) {
    %c0_i32 = arith.constant 0 : i32
    return %arg0, %arg1 : i32, i32
  }
  func.func @transform_1(%arg0: i32, %arg1: i32) -> (i32, i32) {
    %c0_i32 = arith.constant 0 : i32
    %c0_i32_0 = arith.constant 0 : i32
    return %arg1, %c0_i32 : i32, i32
  }
  func.func @transform_2(%arg0: i32, %arg1: i32) -> (i32, i32) {
    %c0_i32 = arith.constant 0 : i32
    %c0_i32_0 = arith.constant 0 : i32
    %c0_i32_1 = arith.constant 0 : i32
    return %c0_i32, %c0_i32_0 : i32, i32
  }
  func.func @transform_3(%arg0: i32, %arg1: i32) -> (i32, i32) {
    %c0_i32 = arith.constant 0 : i32
    %c0_i32_0 = arith.constant 0 : i32
    %c0_i32_1 = arith.constant 0 : i32
    return %c0_i32, %c0_i32_0 : i32, i32
  }
  func.func @transform_4(%arg0: i32, %arg1: i32) -> (i32, i32) {
    %c0_i32 = arith.constant 0 : i32
    %c0_i32_0 = arith.constant 0 : i32
    %c0_i32_1 = arith.constant 0 : i32
    return %c0_i32, %c0_i32_0 : i32, i32
  }
  func.func @transform_5(%arg0: i32, %arg1: i32) -> (i32, i32) {
    %c0_i32 = arith.constant 0 : i32
    %c0_i32_0 = arith.constant 0 : i32
    return %arg0, %c0_i32 : i32, i32
  }
}

module attributes {stable_mosaic.version = 11 : i64} {
  func.func @_backbone_kernel(%arg0: i32, %arg1: i32, %arg2: memref<32x128xbf16, #tpu.memory_space<vmem>>, %arg3: memref<128x128xbf16, #tpu.memory_space<vmem>>, %arg4: memref<1x128xf32, #tpu.memory_space<vmem>>, %arg5: memref<128x128xbf16, #tpu.memory_space<vmem>>, %arg6: memref<1x128xf32, #tpu.memory_space<vmem>>, %arg7: memref<32x128xbf16, #tpu.memory_space<vmem>>, %arg8: memref<32x128xf32, #tpu.memory_space<vmem>>) attributes {dimension_semantics = [#tpu.dimension_semantics<parallel>, #tpu.dimension_semantics<arbitrary>], iteration_bounds = array<i64: 2, 3>, scalar_prefetch = 0 : i64, scratch_operands = 1 : i64, tpu.core_type = #tpu.core_type<tc>, window_params = [{transform_indices = @transform_0, window_bounds = array<i64: 32, 128>}, {transform_indices = @transform_1, window_bounds = array<i64: 128, 128>}, {pipeline_mode = #tpu.pipeline_mode<synchronous>, transform_indices = @transform_2, window_bounds = array<i64: 1, 128>}, {pipeline_mode = #tpu.pipeline_mode<synchronous>, transform_indices = @transform_3, window_bounds = array<i64: 128, 128>}, {pipeline_mode = #tpu.pipeline_mode<synchronous>, transform_indices = @transform_4, window_bounds = array<i64: 1, 128>}, {transform_indices = @transform_5, window_bounds = array<i64: 32, 128>}]} {
    %c0_i32 = arith.constant 0 : i32
    %0 = arith.cmpi eq, %arg1, %c0_i32 : i32
    %1 = arith.extui %0 : i1 to i32
    %c0_i32_0 = arith.constant 0 : i32
    %2 = arith.cmpi ne, %1, %c0_i32_0 : i32
    scf.if %2 {
      %cst_9 = arith.constant 0.000000e+00 : f32
      %12 = vector.broadcast %cst_9 : f32 to vector<32x128xf32>
      %c0_10 = arith.constant 0 : index
      %c0_11 = arith.constant 0 : index
      %13 = vector.load %arg8[%c0_10, %c0_11] : memref<32x128xf32, #tpu.memory_space<vmem>>, vector<32x128xf32>
      tpu.vector_store %arg8[%c0_10, %c0_11], %12 {strides = array<i32>} : memref<32x128xf32, #tpu.memory_space<vmem>>, vector<32x128xf32>,
    } else {
    }
    %c0 = arith.constant 0 : index
    %c0_1 = arith.constant 0 : index
    %3 = vector.load %arg8[%c0, %c0_1] : memref<32x128xf32, #tpu.memory_space<vmem>>, vector<32x128xf32>
    %c0_2 = arith.constant 0 : index
    %c0_3 = arith.constant 0 : index
    %4 = vector.load %arg2[%c0_2, %c0_3] : memref<32x128xbf16, #tpu.memory_space<vmem>>, vector<32x128xbf16>
    %c0_4 = arith.constant 0 : index
    %c0_5 = arith.constant 0 : index
    %5 = vector.load %arg3[%c0_4, %c0_5] : memref<128x128xbf16, #tpu.memory_space<vmem>>, vector<128x128xbf16>
    %cst = arith.constant dense<0.000000e+00> : vector<32x128xf32>
    %6 = tpu.matmul %4, %5, %cst {dimension_numbers = #tpu.dot_dimension_numbers<[1], [0], [0], [1], [0, 0, 1, 1], [], []>} : vector<32x128xbf16>, vector<128x128xbf16>, vector<32x128xf32> -> vector<32x128xf32>
    %7 = arith.addf %3, %6 : vector<32x128xf32>
    %c0_6 = arith.constant 0 : index
    %c0_7 = arith.constant 0 : index
    %8 = vector.load %arg8[%c0_6, %c0_7] : memref<32x128xf32, #tpu.memory_space<vmem>>, vector<32x128xf32>
    tpu.vector_store %arg8[%c0_6, %c0_7], %7 {strides = array<i32>} : memref<32x128xf32, #tpu.memory_space<vmem>>, vector<32x128xf32>,
    %c2_i32 = arith.constant 2 : i32
    %9 = arith.cmpi eq, %arg1, %c2_i32 : i32
    %10 = arith.extui %9 : i1 to i32
    %c0_i32_8 = arith.constant 0 : i32
    %11 = arith.cmpi ne, %10, %c0_i32_8 : i32
    scf.if %11 {
      %c0_9 = arith.constant 0 : index
      %c0_10 = arith.constant 0 : index
      %12 = vector.load %arg8[%c0_9, %c0_10] : memref<32x128xf32, #tpu.memory_space<vmem>>, vector<32x128xf32>
      %cst_11 = arith.constant 6.250000e-02 : f32
      %13 = vector.broadcast %cst_11 : f32 to vector<32x128xf32>
      %14 = arith.mulf %12, %13 : vector<32x128xf32>
      %c0_12 = arith.constant 0 : index
      %c0_13 = arith.constant 0 : index
      %15 = vector.load %arg4[%c0_12, %c0_13] : memref<1x128xf32, #tpu.memory_space<vmem>>, vector<1x128xf32>
      %16 = vector.broadcast %15 : vector<1x128xf32> to vector<32x128xf32>
      %17 = arith.addf %14, %16 : vector<32x128xf32>
      %cst_14 = arith.constant 0.000000e+00 : f32
      %18 = vector.broadcast %cst_14 : f32 to vector<32x128xf32>
      %19 = arith.maximumf %17, %18 : vector<32x128xf32>
      %20 = arith.truncf %19 : vector<32x128xf32> to vector<32x128xbf16>
      %c0_15 = arith.constant 0 : index
      %c0_16 = arith.constant 0 : index
      %21 = vector.load %arg5[%c0_15, %c0_16] : memref<128x128xbf16, #tpu.memory_space<vmem>>, vector<128x128xbf16>
      %cst_17 = arith.constant dense<0.000000e+00> : vector<32x128xf32>
      %22 = tpu.matmul %20, %21, %cst_17 {dimension_numbers = #tpu.dot_dimension_numbers<[1], [0], [0], [1], [0, 0, 1, 1], [], []>} : vector<32x128xbf16>, vector<128x128xbf16>, vector<32x128xf32> -> vector<32x128xf32>
      %c0_18 = arith.constant 0 : index
      %c0_19 = arith.constant 0 : index
      %23 = vector.load %arg6[%c0_18, %c0_19] : memref<1x128xf32, #tpu.memory_space<vmem>>, vector<1x128xf32>
      %24 = vector.broadcast %23 : vector<1x128xf32> to vector<32x128xf32>
      %25 = arith.addf %22, %24 : vector<32x128xf32>
      %26 = arith.truncf %25 : vector<32x128xf32> to vector<32x128xbf16>
      %c0_20 = arith.constant 0 : index
      %c0_21 = arith.constant 0 : index
      %27 = vector.load %arg7[%c0_20, %c0_21] : memref<32x128xbf16, #tpu.memory_space<vmem>>, vector<32x128xbf16>
      tpu.vector_store %arg7[%c0_20, %c0_21], %26 {strides = array<i32>} : memref<32x128xbf16, #tpu.memory_space<vmem>>, vector<32x128xbf16>,
    } else {
    }
    return
  }
  func.func @transform_0(%arg0: i32, %arg1: i32) -> (i32, i32) {
    %c0_i32 = arith.constant 0 : i32
    return %arg0, %arg1 : i32, i32
  }
  func.func @transform_1(%arg0: i32, %arg1: i32) -> (i32, i32) {
    %c0_i32 = arith.constant 0 : i32
    %c0_i32_0 = arith.constant 0 : i32
    return %arg1, %c0_i32 : i32, i32
  }
  func.func @transform_2(%arg0: i32, %arg1: i32) -> (i32, i32) {
    %c0_i32 = arith.constant 0 : i32
    %c0_i32_0 = arith.constant 0 : i32
    %c0_i32_1 = arith.constant 0 : i32
    return %c0_i32, %c0_i32_0 : i32, i32
  }
  func.func @transform_3(%arg0: i32, %arg1: i32) -> (i32, i32) {
    %c0_i32 = arith.constant 0 : i32
    %c0_i32_0 = arith.constant 0 : i32
    %c0_i32_1 = arith.constant 0 : i32
    return %c0_i32, %c0_i32_0 : i32, i32
  }
  func.func @transform_4(%arg0: i32, %arg1: i32) -> (i32, i32) {
    %c0_i32 = arith.constant 0 : i32
    %c0_i32_0 = arith.constant 0 : i32
    %c0_i32_1 = arith.constant 0 : i32
    return %c0_i32, %c0_i32_0 : i32, i32
  }
  func.func @transform_5(%arg0: i32, %arg1: i32) -> (i32, i32) {
    %c0_i32 = arith.constant 0 : i32
    %c0_i32_0 = arith.constant 0 : i32
    return %arg0, %c0_i32 : i32, i32
  }
}

</mosaic_0001>

<llo_original>
// kernel: tpu_custom_call.1
$region0: #{tpu_custom_call.1}
  #allocation0 [shape = 'u32[]', space=smem, size = 0x4, offset = 0x4, fixed_abs, tag = 'smem constant byte address 0x4 - core index']
  #allocation1 [shape = 'u32[144,128]{1,0:T(1,128)}', space=vmem, size = 0x12000, scoped, tag = 'internal scratch']
  #allocation2 [shape = 'f32[32,128]{1,0:T(8,128)}', space=vmem, size = 0x4000, scoped, tag = 'scratch operand']
  %s0 = inlined_call_operand.hbm [shape: bf16[64,384], index: 0, kind: input, shape index: {}]
  %s1 = inlined_call_operand.hbm [shape: bf16[384,128], index: 1, kind: input, shape index: {}]
  %s2 = inlined_call_operand.vmem [shape: f32[1,128], index: 2, kind: input, shape index: {}]
  %s3 = inlined_call_operand.hbm [shape: bf16[128,128], index: 3, kind: input, shape index: {}]
  %s4 = inlined_call_operand.vmem [shape: f32[1,128], index: 4, kind: input, shape index: {}]
  %s5 = inlined_call_operand.hbm [shape: bf16[64,128], index: 5, kind: output, shape index: {}]
  %s6 = sld [smem:[#allocation0]]
  $region73: #{tpu_custom_call.1} parent=0
    _
  %s8 = ssub.s32 1, %s6
  %s9 = scalar_select 0, %s8, %s6
  $region1: #{tpu_custom_call.1} parent=0
    #allocation3 [shape = 'u8[16384]{0}', space=vmem, size = 0x4000, scoped, tag = 'input window, operand 0']
    #allocation4 [shape = 's32[2]{0}', space=sflag, size = 0x8, scoped, tag = 'scoped memory for tpu_custom_call.1']
    #allocation5 [shape = 's32[2]{0}', space=sflag, size = 0x8, scoped, tag = 'scoped memory for tpu_custom_call.1']
    #allocation6 [shape = 'u8[65536]{0}', space=vmem, size = 0x10000, scoped, tag = 'input window, operand 1']
    #allocation7 [shape = 's32[2]{0}', space=sflag, size = 0x8, scoped, tag = 'scoped memory for tpu_custom_call.1']
    #allocation8 [shape = 'u8[32768]{0}', space=vmem, size = 0x8000, scoped, tag = 'input window, operand 3, single buffered']
    #allocation9 [shape = 'u8[16384]{0}', space=vmem, size = 0x4000, scoped, tag = 'output window, operand 0']
    %10 = vsyncpa [#allocation4], 0
    %s11 = scalar_lea.sflag [#allocation4], 1
    %12 = vsyncpa %s11, 0
    %13 = vsyncpa [#allocation7], 0
    %s14 = scalar_lea.sflag [#allocation7], 1
    %15 = vsyncpa %s14, 0
    %16 = vsyncpa [#allocation5], 0
    %s17 = scalar_lea.sflag [#allocation5], 1
    %18 = vsyncpa %s17, 0
    loop: start=0, step=1, limit=8
    $region2: #{tpu_custom_call.1} parent=1 // loop_pre_header
      _
    $region3: #{tpu_custom_call.1} parent=1 // loop_header
      %s20 = sphi 0, %s24
      %p21 = scmp.ge.s32.totalorder %s20, 8
      %s27 = sphi 0, %s39
      %s28 = sphi 0, %s35
      %s29 = sphi 0, %s27
      %s30 = sphi 0, %s28
      %s31 = sphi 0, %s29
      %s32 = sphi 0, %s30
      %s44 = sphi 0, %s46
      %s47 = sphi 0, %s44
      %s48 = sphi 0, %s47
      %s64 = sphi 0, %s48
      %s70 = sphi 0, %s72
      %s73 = sphi 0, %s70
      %s74 = sphi 0, %s73
      %s90 = sphi 0, %s74
      %s94 = sphi 0, %s94
      %s96 = sphi 0, %s94
      %s97 = sphi 0, %s96
      %s111 = sphi 0, %s97
      %s115 = sphi 0, %s115
      %s117 = sphi 0, %s115
      %s118 = sphi 0, %s117
      %s132 = sphi 0, %s118
      %s136 = sphi 0, %s136
      %s138 = sphi 0, %s136
      %s139 = sphi 0, %s138
      %s153 = sphi 0, %s139
      %s159 = sphi 0, %s161
      %s162 = sphi 0, %s159
      %s163 = sphi 0, %s162
      %s179 = sphi 0, %s163
    $region4: #{tpu_custom_call.1} parent=1 // loop_header_branch
      %23 = sbr.rel (%p21) target = $region8
    $region5: #{tpu_custom_call.1} parent=1 // loop_body
      %s25 = ssub.s32 %s20, 1
      %s26 = ssub.s32 %s20, 2
      %s33 = sadd.s32 1, %s28
      %p34 = scmp.ge.s32.totalorder %s33, 3
      %s35 = scalar_select %p34, 0, %s33
      %s36 = sadd.s32 1, %s27
      %s37 = scalar_select %p34, %s36, %s27
      %p38 = scmp.ge.s32.totalorder %s37, 2
      %s39 = scalar_select %p38, 0, %s37
      %s40 = ssub.s32 %s27, %s39
      %s41 = ssub.s32 %s28, %s35
      %s42 = sor.u32 %s40, %s41
      %p43 = scmp.eq.s32.totalorder %s42, 0
      %s45 = sadd.s32 %s44, 1
      %s46 = scalar_select %p43, %s44, %s45
      %p49 = pneg %p43
      %p50 = scmp.eq.s32.totalorder %s20, 5
      %p51 = por %p49, %p50
      %p52 = scmp.ne.s32.totalorder %s44, %s47
      %p53 = scmp.eq.s32.totalorder %s20, 0
      %p54 = por %p52, %p53
      %p55 = scmp.ne.s32.totalorder %s44, %s47
      %p56 = scmp.eq.s32.totalorder %s25, 5
      %p57 = por %p55, %p56
      %p58 = scmp.ne.s32.totalorder %s47, %s48
      %p59 = scmp.eq.s32.totalorder %s25, 0
      %p60 = por %p58, %p59
      %p61 = scmp.ne.s32.totalorder %s47, %s48
      %p62 = scmp.eq.s32.totalorder %s26, 5
      %p63 = por %p61, %p62
      %p65 = scmp.ne.s32.totalorder %s48, %s64
      %p66 = scmp.eq.s32.totalorder %s26, 0
      %p67 = por %p65, %p66
      %s68 = ssub.s32 %s28, %s35
      %p69 = scmp.eq.s32.totalorder %s68, 0
      %s71 = sadd.s32 %s70, 1
      %s72 = scalar_select %p69, %s70, %s71
      %p75 = pneg %p69
      %p76 = scmp.eq.s32.totalorder %s20, 5
      %p77 = por %p75, %p76
      %p78 = scmp.ne.s32.totalorder %s70, %s73
      %p79 = scmp.eq.s32.totalorder %s20, 0
      %p80 = por %p78, %p79
      %p81 = scmp.ne.s32.totalorder %s70, %s73
      %p82 = scmp.eq.s32.totalorder %s25, 5
      %p83 = por %p81, %p82
      %p84 = scmp.ne.s32.totalorder %s73, %s74
      %p85 = scmp.eq.s32.totalorder %s25, 0
      %p86 = por %p84, %p85
      %p87 = scmp.ne.s32.totalorder %s73, %s74
      %p88 = scmp.eq.s32.totalorder %s26, 5
      %p89 = por %p87, %p88
      %p91 = scmp.ne.s32.totalorder %s74, %s90
      %p92 = scmp.eq.s32.totalorder %s26, 0
      %p93 = por %p91, %p92
      %s95 = sadd.s32 %s94, 1
      %p98 = scmp.eq.s32.totalorder %s20, 5
      %p99 = scmp.ne.s32.totalorder %s94, %s96
      %p100 = scmp.eq.s32.totalorder %s20, 0
      %p101 = por %p99, %p100
      %p102 = scmp.ne.s32.totalorder %s94, %s96
      %p103 = scmp.eq.s32.totalorder %s25, 5
      %p104 = por %p102, %p103
      %p105 = scmp.ne.s32.totalorder %s96, %s97
      %p106 = scmp.eq.s32.totalorder %s25, 0
      %p107 = por %p105, %p106
      %p108 = scmp.ne.s32.totalorder %s96, %s97
      %p109 = scmp.eq.s32.totalorder %s26, 5
      %p110 = por %p108, %p109
      %p112 = scmp.ne.s32.totalorder %s97, %s111
      %p113 = scmp.eq.s32.totalorder %s26, 0
      %p114 = por %p112, %p113
      %s116 = sadd.s32 %s115, 1
      %p119 = scmp.eq.s32.totalorder %s20, 5
      %p120 = scmp.ne.s32.totalorder %s115, %s117
      %p121 = scmp.eq.s32.totalorder %s20, 0
      %p122 = por %p120, %p121
      %p123 = scmp.ne.s32.totalorder %s115, %s117
      %p124 = scmp.eq.s32.totalorder %s25, 5
      %p125 = por %p123, %p124
      %p126 = scmp.ne.s32.totalorder %s117, %s118
      %p127 = scmp.eq.s32.totalorder %s25, 0
      %p128 = por %p126, %p127
      %p129 = scmp.ne.s32.totalorder %s117, %s118
      %p130 = scmp.eq.s32.totalorder %s26, 5
      %p131 = por %p129, %p130
      %p133 = scmp.ne.s32.totalorder %s118, %s132
      %p134 = scmp.eq.s32.totalorder %s26, 0
      %p135 = por %p133, %p134
      %s137 = sadd.s32 %s136, 1
      %p140 = scmp.eq.s32.totalorder %s20, 5
      %p141 = scmp.ne.s32.totalorder %s136, %s138
      %p142 = scmp.eq.s32.totalorder %s20, 0
      %p143 = por %p141, %p142
      %p144 = scmp.ne.s32.totalorder %s136, %s138
      %p145 = scmp.eq.s32.totalorder %s25, 5
      %p146 = por %p144, %p145
      %p147 = scmp.ne.s32.totalorder %s138, %s139
      %p148 = scmp.eq.s32.totalorder %s25, 0
      %p149 = por %p147, %p148
      %p150 = scmp.ne.s32.totalorder %s138, %s139
      %p151 = scmp.eq.s32.totalorder %s26, 5
      %p152 = por %p150, %p151
      %p154 = scmp.ne.s32.totalorder %s139, %s153
      %p155 = scmp.eq.s32.totalorder %s26, 0
      %p156 = por %p154, %p155
      %s157 = ssub.s32 %s27, %s39
      %p158 = scmp.eq.s32.totalorder %s157, 0
      %s160 = sadd.s32 %s159, 1
      %s161 = scalar_select %p158, %s159, %s160
      %p164 = pneg %p158
      %p165 = scmp.eq.s32.totalorder %s20, 5
      %p166 = por %p164, %p165
      %p167 = scmp.ne.s32.totalorder %s159, %s162
      %p168 = scmp.eq.s32.totalorder %s20, 0
      %p169 = por %p167, %p168
      %p170 = scmp.ne.s32.totalorder %s159, %s162
      %p171 = scmp.eq.s32.totalorder %s25, 5
      %p172 = por %p170, %p171
      %p173 = scmp.ne.s32.totalorder %s162, %s163
      %p174 = scmp.eq.s32.totalorder %s25, 0
      %p175 = por %p173, %p174
      %p176 = scmp.ne.s32.totalorder %s162, %s163
      %p177 = scmp.eq.s32.totalorder %s26, 5
      %p178 = por %p176, %p177
      %p180 = scmp.ne.s32.totalorder %s163, %s179
      %p181 = scmp.eq.s32.totalorder %s26, 0
      %p182 = por %p180, %p181
      %p183 = scmp.le.s32.totalorder 1, %s20
      %p184 = scmp.lt.s32.totalorder %s20, 7
      %p185 = pnand %p183, %p184
      %p186 = pneg %p185
      // Predicated region
      $region9: #{tpu_custom_call.1} parent=5 // pred_check
        _
      $region10: #{tpu_custom_call.1} parent=5 // pred_check_branch
        %188 = sbr.rel (%p185) target = $region12
      $region11: #{tpu_custom_call.1} parent=5 // pred_region
        %s189 = ssub.s32 %s20, 1
        // Predicated region
        $region13: #{tpu_custom_call.1} parent=11 // pred_check
          %p190 = pneg %p107
        $region14: #{tpu_custom_call.1} parent=11 // pred_check_branch
          %192 = sbr.rel (%p190) target = $region16
        $region15: #{tpu_custom_call.1} parent=11 // pred_region
          _
        $region16: #{tpu_custom_call.1} parent=11 // pred_fallthru
          _
        // Predicated region
        $region17: #{tpu_custom_call.1} parent=11 // pred_check
          %p193 = pneg %p128
        $region18: #{tpu_custom_call.1} parent=11 // pred_check_branch
          %195 = sbr.rel (%p193) target = $region20
        $region19: #{tpu_custom_call.1} parent=11 // pred_region
          %s197 = ssub.s32 1024, 1024
          %198 = vsyncadd [#allocation7], %s197
          %s199 = sshll.u32 [#allocation8], 4
          %s200 = int_to_ptr.vmem [resolvable:$true] %s199
          %205 = dma.hbm_to_vmem [thread:$0]  %s3, 1024, %s200, [#allocation7], 64, 64, 4
        $region20: #{tpu_custom_call.1} parent=11 // pred_fallthru
          _
        // Predicated region
        $region21: #{tpu_custom_call.1} parent=11 // pred_check
          %p206 = pneg %p149
        $region22: #{tpu_custom_call.1} parent=11 // pred_check_branch
          %208 = sbr.rel (%p206) target = $region24
        $region23: #{tpu_custom_call.1} parent=11 // pred_region
          _
        $region24: #{tpu_custom_call.1} parent=11 // pred_fallthru
          _
      $region12: #{tpu_custom_call.1} parent=5 // pred_fallthru
        _
      %p209 = scmp.lt.s32.totalorder %s20, 6
      // Predicated region
      $region25: #{tpu_custom_call.1} parent=5 // pred_check
        %p210 = pneg %p209
      $region26: #{tpu_custom_call.1} parent=5 // pred_check_branch
        %212 = sbr.rel (%p210) target = $region28
      $region27: #{tpu_custom_call.1} parent=5 // pred_region
        // Predicated region
        $region29: #{tpu_custom_call.1} parent=27 // pred_check
          %p213 = pneg %p54
        $region30: #{tpu_custom_call.1} parent=27 // pred_check_branch
          %215 = sbr.rel (%p213) target = $region32
        $region31: #{tpu_custom_call.1} parent=27 // pred_region
          %s216 = sand.u32 %s44, 1
          %s217 = scalar_lea.sflag [#allocation4], %s216
          %s218 = sand.u32 %s44, 1
          %s219 = smul.addr %s218, 16
          %s220 = scalar_lea.vmem [#allocation3], %s219
          %s221 = smul.u32 4, %s27
          %s223 = ssub.s32 256, 256
          %224 = vsyncadd %s217, %s223
          %s225 = smul.addr %s221, 3
          %s226 = sadd.s32 %s28, %s225
          %s227 = smul.addr %s226, 64
          %s228 = scalar_lea.hbm %s0, %s227
          %s229 = sshll.u32 %s220, 4
          %s230 = int_to_ptr.vmem [resolvable:$true] %s229
          %235 = dma.hbm_to_vmem [thread:$0]  %s228, 256, %s230, %s217, 192, 64, 4
        $region32: #{tpu_custom_call.1} parent=27 // pred_fallthru
          _
        // Predicated region
        $region33: #{tpu_custom_call.1} parent=27 // pred_check
          %p236 = pneg %p80
        $region34: #{tpu_custom_call.1} parent=27 // pred_check_branch
          %238 = sbr.rel (%p236) target = $region36
        $region35: #{tpu_custom_call.1} parent=27 // pred_region
          %s239 = sand.u32 %s20, 1
          %s240 = scalar_lea.sflag [#allocation7], %s239
          %s241 = sand.u32 %s70, 1
          %s242 = smul.addr %s241, 64
          %s243 = scalar_lea.vmem [#allocation6], %s242
          %s244 = smul.u32 16, %s28
          %s246 = ssub.s32 1024, 1024
          %247 = vsyncadd %s240, %s246
          %s248 = smul.addr %s244, 64
          %s249 = scalar_lea.hbm %s1, %s248
          %s250 = sshll.u32 %s243, 4
          %s251 = int_to_ptr.vmem [resolvable:$true] %s250
          %256 = dma.hbm_to_vmem [thread:$0]  %s249, 1024, %s251, %s240, 64, 64, 4
        $region36: #{tpu_custom_call.1} parent=27 // pred_fallthru
          _
      $region28: #{tpu_custom_call.1} parent=5 // pred_fallthru
        _
      %p257 = scmp.le.s32.totalorder 1, %s20
      %p258 = scmp.lt.s32.totalorder %s20, 7
      %p259 = pnand %p257, %p258
      %p260 = pneg %p259
      // Predicated region
      $region37: #{tpu_custom_call.1} parent=5 // pred_check
        _
      $region38: #{tpu_custom_call.1} parent=5 // pred_check_branch
        %262 = sbr.rel (%p259) target = $region40
      $region39: #{tpu_custom_call.1} parent=5 // pred_region
        %s263 = ssub.s32 %s20, 1
        %s264 = sand.u32 %s47, 1
        %s265 = scalar_lea.sflag [#allocation4], %s264
        %s266 = sand.u32 %s47, 1
        %s267 = smul.addr %s266, 16
        %s268 = scalar_lea.vmem [#allocation3], %s267
        // Predicated region
        $region41: #{tpu_custom_call.1} parent=39 // pred_check
          %p269 = pneg %p60
        $region42: #{tpu_custom_call.1} parent=39 // pred_check_branch
          %271 = sbr.rel (%p269) target = $region44
        $region43: #{tpu_custom_call.1} parent=39 // pred_region
          %272 = dma.done %s265, 256
        $region44: #{tpu_custom_call.1} parent=39 // pred_fallthru
          _
        %s273 = sand.u32 %s25, 1
        %s274 = scalar_lea.sflag [#allocation7], %s273
        %s275 = sand.u32 %s73, 1
        %s276 = smul.addr %s275, 64
        %s277 = scalar_lea.vmem [#allocation6], %s276
        // Predicated region
        $region45: #{tpu_custom_call.1} parent=39 // pred_check
          %p278 = pneg %p86
        $region46: #{tpu_custom_call.1} parent=39 // pred_check_branch
          %280 = sbr.rel (%p278) target = $region48
        $region47: #{tpu_custom_call.1} parent=39 // pred_region
          %281 = dma.done %s274, 1024
        $region48: #{tpu_custom_call.1} parent=39 // pred_fallthru
          _
        // Predicated region
        $region49: #{tpu_custom_call.1} parent=39 // pred_check
          %p282 = pneg %p128
        $region50: #{tpu_custom_call.1} parent=39 // pred_check_branch
          %284 = sbr.rel (%p282) target = $region52
        $region51: #{tpu_custom_call.1} parent=39 // pred_region
          %285 = dma.done [#allocation7], 1024
        $region52: #{tpu_custom_call.1} parent=39 // pred_fallthru
          _
        %s286 = sand.u32 %s47, 1
        %s287 = scalar_lea.sflag [#allocation4], %s286
        %s288 = sand.u32 %s47, 1
        %s289 = smul.addr %s288, 16
        %s290 = scalar_lea.vmem [#allocation3], %s289
        %p291 = pneg %p60
        %p292 = pneg %p57
        %s293 = sand.u32 %s25, 1
        %s294 = scalar_lea.sflag [#allocation7], %s293
        %s295 = sand.u32 %s73, 1
        %s296 = smul.addr %s295, 64
        %s297 = scalar_lea.vmem [#allocation6], %s296
        %p298 = pneg %p86
        %p299 = pneg %p83
        %p300 = pneg %p107
        %p301 = pneg %p104
        %p302 = pneg %p128
        %p303 = pneg %p125
        %p304 = pneg %p149
        %p305 = pneg %p146
        %p306 = pneg %p175
        %p307 = pneg %p172
        %s308 = sand.u32 %s162, 1
        %s309 = scalar_lea.sflag [#allocation5], %s308
        %s310 = sand.u32 %s162, 1
        %s311 = smul.addr %s310, 16
        %s312 = scalar_lea.vmem [#allocation9], %s311
        %s313 = smul.u32 4, %s29
        %s314 = smul.u32 16, %s30
        %s315 = smul.u32 4, %s29
        %p317 = scmp.eq.s32.totalorder %s30, 0
        // Predicated region
        $region53: #{tpu_custom_call.1} parent=39 // pred_check
          %p318 = pneg %p317
        $region54: #{tpu_custom_call.1} parent=39 // pred_check_branch
          %320 = sbr.rel (%p318) target = $region56
        $region55: #{tpu_custom_call.1} parent=39 // pred_region
          %321 = vst [vmem:[#allocation2] sm:$0xff] 0.0
          %322 = vst [vmem:[#allocation2 + $0x8] sm:$0xff] 0.0
          %323 = vst [vmem:[#allocation2 + $0x10] sm:$0xff] 0.0
          %324 = vst [vmem:[#allocation2 + $0x18] sm:$0xff] 0.0
        $region56: #{tpu_custom_call.1} parent=39 // pred_fallthru
          _
        %v325 = vld [vmem:[#allocation2] sm:$0xff]
        %v326 = vld [vmem:[#allocation2 + $0x8] sm:$0xff]
        %v327 = vld [vmem:[#allocation2 + $0x10] sm:$0xff]
        %v328 = vld [vmem:[#allocation2 + $0x18] sm:$0xff]
        %v329 = vld [vmem:[%s268] sm:$0xf]
        %v330 = vld [vmem:[%s268 + $0x4] sm:$0xf]
        %v331 = vld [vmem:[%s268 + $0x8] sm:$0xf]
        %v332 = vld [vmem:[%s268 + $0xc] sm:$0xf]
        %v333 = vld [vmem:[%s277] sm:$0xf]
        %v334 = vld [vmem:[%s277 + $0x4] sm:$0xf]
        %v335 = vld [vmem:[%s277 + $0x8] sm:$0xf]
        %v336 = vld [vmem:[%s277 + $0xc] sm:$0xf]
        %v337 = vld [vmem:[%s277 + $0x10] sm:$0xf]
        %v338 = vld [vmem:[%s277 + $0x14] sm:$0xf]
        %v339 = vld [vmem:[%s277 + $0x18] sm:$0xf]
        %v340 = vld [vmem:[%s277 + $0x1c] sm:$0xf]
        %v341 = vld [vmem:[%s277 + $0x20] sm:$0xf]
        %v342 = vld [vmem:[%s277 + $0x24] sm:$0xf]
        %v343 = vld [vmem:[%s277 + $0x28] sm:$0xf]
        %v344 = vld [vmem:[%s277 + $0x2c] sm:$0xf]
        %v345 = vld [vmem:[%s277 + $0x30] sm:$0xf]
        %v346 = vld [vmem:[%s277 + $0x34] sm:$0xf]
        %v347 = vld [vmem:[%s277 + $0x38] sm:$0xf]
        %v348 = vld [vmem:[%s277 + $0x3c] sm:$0xf]
        %v353 = vunpack.c.l.b16 %v329
        %v354 = vunpack.c.l.b16 %v330
        %v355 = vunpack.c.l.b16 %v331
        %v356 = vunpack.c.l.b16 %v332
        %v357 = vpack.c.b16 %v354, %v353
        %v358 = vpack.c.b16 %v356, %v355
        %v377 = vunpack.c.l.b16 %v333
        %v378 = vunpack.c.l.b16 %v334
        %v379 = vunpack.c.l.b16 %v335
        %v380 = vunpack.c.l.b16 %v336
        %v381 = vunpack.c.l.b16 %v337
        %v382 = vunpack.c.l.b16 %v338
        %v383 = vunpack.c.l.b16 %v339
        %v384 = vunpack.c.l.b16 %v340
        %v385 = vunpack.c.l.b16 %v341
        %v386 = vunpack.c.l.b16 %v342
        %v387 = vunpack.c.l.b16 %v343
        %v388 = vunpack.c.l.b16 %v344
        %v389 = vunpack.c.l.b16 %v345
        %v390 = vunpack.c.l.b16 %v346
        %v391 = vunpack.c.l.b16 %v347
        %v392 = vunpack.c.l.b16 %v348
        %v393 = vpack.c.b16 %v378, %v377
        %v394 = vpack.c.b16 %v380, %v379
        %v395 = vpack.c.b16 %v382, %v381
        %v396 = vpack.c.b16 %v384, %v383
        %v397 = vpack.c.b16 %v386, %v385
        %v398 = vpack.c.b16 %v388, %v387
        %v399 = vpack.c.b16 %v390, %v389
        %v400 = vpack.c.b16 %v392, %v391
        %409 = vmatprep.subr.bf16.mxu0 0
        %410 = vmatpush1.bf16.msra.mxu0 %v393
        %411 = vmatprep.subr.bf16.mxu0 0
        %412 = vmatpush1.bf16.msra.mxu0 %v394
        %413 = vmatprep.subr.bf16.mxu0 0
        %414 = vmatpush1.bf16.msra.mxu0 %v395
        %415 = vmatprep.subr.bf16.mxu0 0
        %416 = vmatpush1.bf16.msra.mxu0 %v396
        %417 = vmatprep.subr.bf16.mxu0 0
        %418 = vmatpush1.bf16.msra.mxu0 %v397
        %419 = vmatprep.subr.bf16.mxu0 0
        %420 = vmatpush1.bf16.msra.mxu0 %v398
        %421 = vmatprep.subr.bf16.mxu0 0
        %422 = vmatpush1.bf16.msra.mxu0 %v399
        %423 = vmatprep.subr.bf16.mxu0 0
        %424 = vmatpush1.bf16.msra.mxu0 %v400
        %425 = vmatprep.subr.bf16.mxu0 0
        %426 = vmatpush1.bf16.msra.mxu0 0
        %427 = vmatprep.subr.bf16.mxu0 0
        %428 = vmatpush1.bf16.msra.mxu0 0
        %429 = vmatprep.subr.bf16.mxu0 0
        %430 = vmatpush1.bf16.msra.mxu0 0
        %431 = vmatprep.subr.bf16.mxu0 0
        %432 = vmatpush1.bf16.msra.mxu0 0
        %433 = vmatprep.subr.bf16.mxu0 0
        %434 = vmatpush1.bf16.msra.mxu0 0
        %435 = vmatprep.subr.bf16.mxu0 0
        %436 = vmatpush1.bf16.msra.mxu0 0
        %437 = vmatprep.subr.bf16.mxu0 0
        %438 = vmatpush1.bf16.msra.mxu0 0
        %439 = vmatprep.subr.bf16.mxu0 0
        %440 = vmatpush1.bf16.msra.mxu0 0
        %441 = vmatprep.mubr.bf16.mxu0 0
        %442 = vmatmul.mubr.bf16.gmra.mrb[0].mxu0 %v357
        %v443 = vpop.f32.mrb[0].mxu0
        %v444 = vadd.f32 0.0, %v443
        %v445 = vpop.f32.mrb[0].mxu0
        %v446 = vpop.f32.mrb[0].mxu0
        %v447 = vadd.f32 0.0, %v446
        %v448 = vpop.f32.mrb[0].mxu0
        %449 = vmatprep.mubr.bf16.mxu0 0
        %450 = vmatmul.mubr.bf16.gmra.mrb[0].mxu0 %v358
        %v451 = vpop.f32.mrb[0].mxu0
        %v452 = vadd.f32 0.0, %v451
        %v453 = vpop.f32.mrb[0].mxu0
        %v454 = vpop.f32.mrb[0].mxu0
        %v455 = vadd.f32 0.0, %v454
        %v456 = vpop.f32.mrb[0].mxu0
        %457 = vdwg.mxu0
        %v458 = vadd.f32 %v325, %v444
        %v459 = vadd.f32 %v326, %v447
        %v460 = vadd.f32 %v327, %v452
        %v461 = vadd.f32 %v328, %v455
        %462 = vst [vmem:[#allocation2] sm:$0xff] %v458
        %463 = vst [vmem:[#allocation2 + $0x8] sm:$0xff] %v459
        %464 = vst [vmem:[#allocation2 + $0x10] sm:$0xff] %v460
        %465 = vst [vmem:[#allocation2 + $0x18] sm:$0xff] %v461
        %p466 = scmp.eq.s32.totalorder %s30, 2
        // Predicated region
        $region57: #{tpu_custom_call.1} parent=39 // pred_check
          %p467 = pneg %p466
        $region58: #{tpu_custom_call.1} parent=39 // pred_check_branch
          %469 = sbr.rel (%p467) target = $region60
        $region59: #{tpu_custom_call.1} parent=39 // pred_region
          %v470 = vld [vmem:[#allocation2] sm:$0xff]
          %v471 = vld [vmem:[#allocation2 + $0x8] sm:$0xff]
          %v472 = vld [vmem:[#allocation2 + $0x10] sm:$0xff]
          %v473 = vld [vmem:[#allocation2 + $0x18] sm:$0xff]
          %v474 = vmul.f32 %v470, 0.0625
          %v475 = vmul.f32 %v471, 0.0625
          %v476 = vmul.f32 %v472, 0.0625
          %v477 = vmul.f32 %v473, 0.0625
          %v478 = vld [vmem:[%s2] sm:$0x1]
          %v480 = vlaneseq
          %v481 = vshrl.u32 %v480, 7
          %v482 = vsub.s32 0, %v481
          %v483 = vrot.slane %v478, %v482
          %v485 = vadd.f32 %v474, %v483
          %v486 = vadd.f32 %v475, %v483
          %v487 = vadd.f32 %v476, %v483
          %v488 = vadd.f32 %v477, %v483
          %v489 = vmax.f32 %v485, 0.0
          %v490 = vmax.f32 %v486, 0.0
          %v491 = vmax.f32 %v487, 0.0
          %v492 = vmax.f32 %v488, 0.0
          %v493 = vpack.c.bf16 %v490, %v489
          %v494 = vpack.c.bf16 %v492, %v491
          %v495 = vld [vmem:[#allocation8] sm:$0xf]
          %v496 = vld [vmem:[#allocation8 + $0x4] sm:$0xf]
          %v497 = vld [vmem:[#allocation8 + $0x8] sm:$0xf]
          %v498 = vld [vmem:[#allocation8 + $0xc] sm:$0xf]
          %v499 = vld [vmem:[#allocation8 + $0x10] sm:$0xf]
          %v500 = vld [vmem:[#allocation8 + $0x14] sm:$0xf]
          %v501 = vld [vmem:[#allocation8 + $0x18] sm:$0xf]
          %v502 = vld [vmem:[#allocation8 + $0x1c] sm:$0xf]
          %v503 = vld [vmem:[#allocation8 + $0x20] sm:$0xf]
          %v504 = vld [vmem:[#allocation8 + $0x24] sm:$0xf]
          %v505 = vld [vmem:[#allocation8 + $0x28] sm:$0xf]
          %v506 = vld [vmem:[#allocation8 + $0x2c] sm:$0xf]
          %v507 = vld [vmem:[#allocation8 + $0x30] sm:$0xf]
          %v508 = vld [vmem:[#allocation8 + $0x34] sm:$0xf]
          %v509 = vld [vmem:[#allocation8 + $0x38] sm:$0xf]
          %v510 = vld [vmem:[#allocation8 + $0x3c] sm:$0xf]
          %v511 = vld [vmem:[%s4] sm:$0x1]
          %v513 = vlaneseq
          %v514 = vshrl.u32 %v513, 7
          %v515 = vsub.s32 0, %v514
          %v516 = vrot.slane %v511, %v515
          %v534 = vunpack.c.l.b16 %v495
          %v535 = vunpack.c.l.b16 %v496
          %v536 = vunpack.c.l.b16 %v497
          %v537 = vunpack.c.l.b16 %v498
          %v538 = vunpack.c.l.b16 %v499
          %v539 = vunpack.c.l.b16 %v500
          %v540 = vunpack.c.l.b16 %v501
          %v541 = vunpack.c.l.b16 %v502
          %v542 = vunpack.c.l.b16 %v503
          %v543 = vunpack.c.l.b16 %v504
          %v544 = vunpack.c.l.b16 %v505
          %v545 = vunpack.c.l.b16 %v506
          %v546 = vunpack.c.l.b16 %v507
          %v547 = vunpack.c.l.b16 %v508
          %v548 = vunpack.c.l.b16 %v509
          %v549 = vunpack.c.l.b16 %v510
          %v550 = vpack.c.b16 %v535, %v534
          %v551 = vpack.c.b16 %v537, %v536
          %v552 = vpack.c.b16 %v539, %v538
          %v553 = vpack.c.b16 %v541, %v540
          %v554 = vpack.c.b16 %v543, %v542
          %v555 = vpack.c.b16 %v545, %v544
          %v556 = vpack.c.b16 %v547, %v546
          %v557 = vpack.c.b16 %v549, %v548
          %566 = vmatprep.subr.bf16.mxu0 0
          %567 = vmatpush1.bf16.msra.mxu0 %v550
          %568 = vmatprep.subr.bf16.mxu0 0
          %569 = vmatpush1.bf16.msra.mxu0 %v551
          %570 = vmatprep.subr.bf16.mxu0 0
          %571 = vmatpush1.bf16.msra.mxu0 %v552
          %572 = vmatprep.subr.bf16.mxu0 0
          %573 = vmatpush1.bf16.msra.mxu0 %v553
          %574 = vmatprep.subr.bf16.mxu0 0
          %575 = vmatpush1.bf16.msra.mxu0 %v554
          %576 = vmatprep.subr.bf16.mxu0 0
          %577 = vmatpush1.bf16.msra.mxu0 %v555
          %578 = vmatprep.subr.bf16.mxu0 0
          %579 = vmatpush1.bf16.msra.mxu0 %v556
          %580 = vmatprep.subr.bf16.mxu0 0
          %581 = vmatpush1.bf16.msra.mxu0 %v557
          %582 = vmatprep.subr.bf16.mxu0 0
          %583 = vmatpush1.bf16.msra.mxu0 0
          %584 = vmatprep.subr.bf16.mxu0 0
          %585 = vmatpush1.bf16.msra.mxu0 0
          %586 = vmatprep.subr.bf16.mxu0 0
          %587 = vmatpush1.bf16.msra.mxu0 0
          %588 = vmatprep.subr.bf16.mxu0 0
          %589 = vmatpush1.bf16.msra.mxu0 0
          %590 = vmatprep.subr.bf16.mxu0 0
          %591 = vmatpush1.bf16.msra.mxu0 0
          %592 = vmatprep.subr.bf16.mxu0 0
          %593 = vmatpush1.bf16.msra.mxu0 0
          %594 = vmatprep.subr.bf16.mxu0 0
          %595 = vmatpush1.bf16.msra.mxu0 0
          %596 = vmatprep.subr.bf16.mxu0 0
          %597 = vmatpush1.bf16.msra.mxu0 0
          %598 = vmatprep.mubr.bf16.mxu0 0
          %599 = vmatmul.mubr.bf16.gmra.mrb[0].mxu0 %v493
          %v600 = vpop.f32.mrb[0].mxu0
          %v601 = vadd.f32 %v516, %v600
          %v602 = vpop.f32.mrb[0].mxu0
          %v603 = vpop.f32.mrb[0].mxu0
          %v604 = vadd.f32 %v516, %v603
          %v605 = vpop.f32.mrb[0].mxu0
          %606 = vmatprep.mubr.bf16.mxu0 0
          %607 = vmatmul.mubr.bf16.gmra.mrb[0].mxu0 %v494
          %v608 = vpop.f32.mrb[0].mxu0
          %v609 = vadd.f32 %v516, %v608
          %v610 = vpop.f32.mrb[0].mxu0
          %v611 = vpop.f32.mrb[0].mxu0
          %v612 = vadd.f32 %v516, %v611
          %v613 = vpop.f32.mrb[0].mxu0
          %614 = vdwg.mxu0
          %v615 = vpack.c.bf16 %v604, %v601
          %v616 = vpack.c.bf16 %v612, %v609
          %v619 = vunpack.c.l.b16 %v615
          %v620 = vunpack.c.h.b16 %v615
          %v621 = vunpack.c.l.b16 %v616
          %v622 = vunpack.c.h.b16 %v616
          %v623 = vpack.c.b16 %v619, %v619
          %v624 = vpack.c.b16 %v620, %v620
          %v625 = vpack.c.b16 %v621, %v621
          %v626 = vpack.c.b16 %v622, %v622
          %631 = vst [vmem:[%s312] sm:$0xf] %v623
          %632 = vst [vmem:[%s312 + $0x4] sm:$0xf] %v624
          %633 = vst [vmem:[%s312 + $0x8] sm:$0xf] %v625
          %634 = vst [vmem:[%s312 + $0xc] sm:$0xf] %v626
        $region60: #{tpu_custom_call.1} parent=39 // pred_fallthru
          _
        %s635 = sand.u32 %s162, 1
        %s636 = scalar_lea.sflag [#allocation5], %s635
        %s637 = sand.u32 %s162, 1
        %s638 = smul.addr %s637, 16
        %s639 = scalar_lea.vmem [#allocation9], %s638
        // Predicated region
        $region61: #{tpu_custom_call.1} parent=39 // pred_check
          %p640 = pneg %p172
        $region62: #{tpu_custom_call.1} parent=39 // pred_check_branch
          %642 = sbr.rel (%p640) target = $region64
        $region63: #{tpu_custom_call.1} parent=39 // pred_region
          %s643 = smul.u32 4, %s29
          %s645 = ssub.s32 256, 256
          %646 = vsyncadd %s636, %s645
          %s647 = smul.addr %s643, 64
          %s648 = scalar_lea.hbm %s5, %s647
          %s649 = sshll.u32 %s639, 4
          %s650 = int_to_ptr.vmem [resolvable:$true] %s649
          %655 = dma.vmem_to_hbm [thread:$0]  %s650, 256, %s648, %s636, 64, 64, 4
        $region64: #{tpu_custom_call.1} parent=39 // pred_fallthru
          _
      $region40: #{tpu_custom_call.1} parent=5 // pred_fallthru
        _
      %p656 = scmp.le.s32.totalorder 2, %s20
      // Predicated region
      $region65: #{tpu_custom_call.1} parent=5 // pred_check
        %p657 = pneg %p656
      $region66: #{tpu_custom_call.1} parent=5 // pred_check_branch
        %659 = sbr.rel (%p657) target = $region68
      $region67: #{tpu_custom_call.1} parent=5 // pred_region
        %s660 = ssub.s32 %s20, 2
        // Predicated region
        $region69: #{tpu_custom_call.1} parent=67 // pred_check
          %p661 = pneg %p178
        $region70: #{tpu_custom_call.1} parent=67 // pred_check_branch
          %663 = sbr.rel (%p661) target = $region72
        $region71: #{tpu_custom_call.1} parent=67 // pred_region
          %s664 = sand.u32 %s163, 1
          %s665 = scalar_lea.sflag [#allocation5], %s664
          %s666 = sand.u32 %s163, 1
          %s667 = smul.addr %s666, 16
          %s668 = scalar_lea.vmem [#allocation9], %s667
          %669 = dma.done %s665, 256
        $region72: #{tpu_custom_call.1} parent=67 // pred_fallthru
          _
      $region68: #{tpu_custom_call.1} parent=5 // pred_fallthru
        _
    $region6: #{tpu_custom_call.1} parent=1 // loop_footer
      %s24 = sadd.s32 1, %s20
    $region7: #{tpu_custom_call.1} parent=1 // loop_footer_branch
      %19 = sbr.rel target = $region3
    $region8: #{tpu_custom_call.1} parent=1 // loop_exit
      _
    %670 = vsyncpa [#allocation4], 1
    %s671 = scalar_lea.sflag [#allocation4], 1
    %672 = vsyncpa %s671, 1
    %673 = vsyncpa [#allocation7], 1
    %s674 = scalar_lea.sflag [#allocation7], 1
    %675 = vsyncpa %s674, 1
    %676 = vsyncpa [#allocation5], 1
    %s677 = scalar_lea.sflag [#allocation5], 1
    %678 = vsyncpa %s677, 1

// kernel: tpu_custom_call.1
$region0: #{tpu_custom_call.1}
  #allocation0 [shape = 'u32[]', space=smem, size = 0x4, offset = 0x4, fixed_abs, tag = 'smem constant byte address 0x4 - core index']
  #allocation1 [shape = 'u32[144,128]{1,0:T(1,128)}', space=vmem, size = 0x12000, scoped, tag = 'internal scratch']
  #allocation2 [shape = 'f32[32,128]{1,0:T(8,128)}', space=vmem, size = 0x4000, scoped, tag = 'scratch operand']
  %s0 = inlined_call_operand.hbm [shape: bf16[64,384], index: 0, kind: input, shape index: {}]
  %s1 = inlined_call_operand.hbm [shape: bf16[384,128], index: 1, kind: input, shape index: {}]
  %s2 = inlined_call_operand.vmem [shape: f32[1,128], index: 2, kind: input, shape index: {}]
  %s3 = inlined_call_operand.hbm [shape: bf16[128,128], index: 3, kind: input, shape index: {}]
  %s4 = inlined_call_operand.vmem [shape: f32[1,128], index: 4, kind: input, shape index: {}]
  %s5 = inlined_call_operand.hbm [shape: bf16[64,128], index: 5, kind: output, shape index: {}]
  %s6 = sld [smem:[#allocation0]]
  $region73: #{tpu_custom_call.1} parent=0
    _
  %s8 = ssub.s32 1, %s6
  %s9 = scalar_select 0, %s8, %s6
  $region1: #{tpu_custom_call.1} parent=0
    #allocation3 [shape = 'u8[16384]{0}', space=vmem, size = 0x4000, scoped, tag = 'input window, operand 0']
    #allocation4 [shape = 's32[2]{0}', space=sflag, size = 0x8, scoped, tag = 'scoped memory for tpu_custom_call.1']
    #allocation5 [shape = 's32[2]{0}', space=sflag, size = 0x8, scoped, tag = 'scoped memory for tpu_custom_call.1']
    #allocation6 [shape = 'u8[65536]{0}', space=vmem, size = 0x10000, scoped, tag = 'input window, operand 1']
    #allocation7 [shape = 's32[2]{0}', space=sflag, size = 0x8, scoped, tag = 'scoped memory for tpu_custom_call.1']
    #allocation8 [shape = 'u8[32768]{0}', space=vmem, size = 0x8000, scoped, tag = 'input window, operand 3, single buffered']
    #allocation9 [shape = 'u8[16384]{0}', space=vmem, size = 0x4000, scoped, tag = 'output window, operand 0']
    %10 = vsyncpa [#allocation4], 0
    %s11 = scalar_lea.sflag [#allocation4], 1
    %12 = vsyncpa %s11, 0
    %13 = vsyncpa [#allocation7], 0
    %s14 = scalar_lea.sflag [#allocation7], 1
    %15 = vsyncpa %s14, 0
    %16 = vsyncpa [#allocation5], 0
    %s17 = scalar_lea.sflag [#allocation5], 1
    %18 = vsyncpa %s17, 0
    loop: start=0, step=1, limit=8
    $region2: #{tpu_custom_call.1} parent=1 // loop_pre_header
      _
    $region3: #{tpu_custom_call.1} parent=1 // loop_header
      %s20 = sphi 0, %s24
      %p21 = scmp.ge.s32.totalorder %s20, 8
      %s27 = sphi 0, %s39
      %s28 = sphi 0, %s35
      %s29 = sphi 0, %s27
      %s30 = sphi 0, %s28
      %s31 = sphi 0, %s29
      %s32 = sphi 0, %s30
      %s44 = sphi 0, %s46
      %s47 = sphi 0, %s44
      %s48 = sphi 0, %s47
      %s64 = sphi 0, %s48
      %s70 = sphi 0, %s72
      %s73 = sphi 0, %s70
      %s74 = sphi 0, %s73
      %s90 = sphi 0, %s74
      %s94 = sphi 0, %s94
      %s96 = sphi 0, %s94
      %s97 = sphi 0, %s96
      %s111 = sphi 0, %s97
      %s115 = sphi 0, %s115
      %s117 = sphi 0, %s115
      %s118 = sphi 0, %s117
      %s132 = sphi 0, %s118
      %s136 = sphi 0, %s136
      %s138 = sphi 0, %s136
      %s139 = sphi 0, %s138
      %s153 = sphi 0, %s139
      %s159 = sphi 0, %s161
      %s162 = sphi 0, %s159
      %s163 = sphi 0, %s162
      %s179 = sphi 0, %s163
    $region4: #{tpu_custom_call.1} parent=1 // loop_header_branch
      %23 = sbr.rel (%p21) target = $region8
    $region5: #{tpu_custom_call.1} parent=1 // loop_body
      %s25 = ssub.s32 %s20, 1
      %s26 = ssub.s32 %s20, 2
      %s33 = sadd.s32 1, %s28
      %p34 = scmp.ge.s32.totalorder %s33, 3
      %s35 = scalar_select %p34, 0, %s33
      %s36 = sadd.s32 1, %s27
      %s37 = scalar_select %p34, %s36, %s27
      %p38 = scmp.ge.s32.totalorder %s37, 2
      %s39 = scalar_select %p38, 0, %s37
      %s40 = ssub.s32 %s27, %s39
      %s41 = ssub.s32 %s28, %s35
      %s42 = sor.u32 %s40, %s41
      %p43 = scmp.eq.s32.totalorder %s42, 0
      %s45 = sadd.s32 %s44, 1
      %s46 = scalar_select %p43, %s44, %s45
      %p49 = pneg %p43
      %p50 = scmp.eq.s32.totalorder %s20, 5
      %p51 = por %p49, %p50
      %p52 = scmp.ne.s32.totalorder %s44, %s47
      %p53 = scmp.eq.s32.totalorder %s20, 0
      %p54 = por %p52, %p53
      %p55 = scmp.ne.s32.totalorder %s44, %s47
      %p56 = scmp.eq.s32.totalorder %s25, 5
      %p57 = por %p55, %p56
      %p58 = scmp.ne.s32.totalorder %s47, %s48
      %p59 = scmp.eq.s32.totalorder %s25, 0
      %p60 = por %p58, %p59
      %p61 = scmp.ne.s32.totalorder %s47, %s48
      %p62 = scmp.eq.s32.totalorder %s26, 5
      %p63 = por %p61, %p62
      %p65 = scmp.ne.s32.totalorder %s48, %s64
      %p66 = scmp.eq.s32.totalorder %s26, 0
      %p67 = por %p65, %p66
      %s68 = ssub.s32 %s28, %s35
      %p69 = scmp.eq.s32.totalorder %s68, 0
      %s71 = sadd.s32 %s70, 1
      %s72 = scalar_select %p69, %s70, %s71
      %p75 = pneg %p69
      %p76 = scmp.eq.s32.totalorder %s20, 5
      %p77 = por %p75, %p76
      %p78 = scmp.ne.s32.totalorder %s70, %s73
      %p79 = scmp.eq.s32.totalorder %s20, 0
      %p80 = por %p78, %p79
      %p81 = scmp.ne.s32.totalorder %s70, %s73
      %p82 = scmp.eq.s32.totalorder %s25, 5
      %p83 = por %p81, %p82
      %p84 = scmp.ne.s32.totalorder %s73, %s74
      %p85 = scmp.eq.s32.totalorder %s25, 0
      %p86 = por %p84, %p85
      %p87 = scmp.ne.s32.totalorder %s73, %s74
      %p88 = scmp.eq.s32.totalorder %s26, 5
      %p89 = por %p87, %p88
      %p91 = scmp.ne.s32.totalorder %s74, %s90
      %p92 = scmp.eq.s32.totalorder %s26, 0
      %p93 = por %p91, %p92
      %s95 = sadd.s32 %s94, 1
      %p98 = scmp.eq.s32.totalorder %s20, 5
      %p99 = scmp.ne.s32.totalorder %s94, %s96
      %p100 = scmp.eq.s32.totalorder %s20, 0
      %p101 = por %p99, %p100
      %p102 = scmp.ne.s32.totalorder %s94, %s96
      %p103 = scmp.eq.s32.totalorder %s25, 5
      %p104 = por %p102, %p103
      %p105 = scmp.ne.s32.totalorder %s96, %s97
      %p106 = scmp.eq.s32.totalorder %s25, 0
      %p107 = por %p105, %p106
      %p108 = scmp.ne.s32.totalorder %s96, %s97
      %p109 = scmp.eq.s32.totalorder %s26, 5
      %p110 = por %p108, %p109
      %p112 = scmp.ne.s32.totalorder %s97, %s111
      %p113 = scmp.eq.s32.totalorder %s26, 0
      %p114 = por %p112, %p113
      %s116 = sadd.s32 %s115, 1
      %p119 = scmp.eq.s32.totalorder %s20, 5
      %p120 = scmp.ne.s32.totalorder %s115, %s117
      %p121 = scmp.eq.s32.totalorder %s20, 0
      %p122 = por %p120, %p121
      %p123 = scmp.ne.s32.totalorder %s115, %s117
      %p124 = scmp.eq.s32.totalorder %s25, 5
      %p125 = por %p123, %p124
      %p126 = scmp.ne.s32.totalorder %s117, %s118
      %p127 = scmp.eq.s32.totalorder %s25, 0
      %p128 = por %p126, %p127
      %p129 = scmp.ne.s32.totalorder %s117, %s118
      %p130 = scmp.eq.s32.totalorder %s26, 5
      %p131 = por %p129, %p130
      %p133 = scmp.ne.s32.totalorder %s118, %s132
      %p134 = scmp.eq.s32.totalorder %s26, 0
      %p135 = por %p133, %p134
      %s137 = sadd.s32 %s136, 1
      %p140 = scmp.eq.s32.totalorder %s20, 5
      %p141 = scmp.ne.s32.totalorder %s136, %s138
      %p142 = scmp.eq.s32.totalorder %s20, 0
      %p143 = por %p141, %p142
      %p144 = scmp.ne.s32.totalorder %s136, %s138
      %p145 = scmp.eq.s32.totalorder %s25, 5
      %p146 = por %p144, %p145
      %p147 = scmp.ne.s32.totalorder %s138, %s139
      %p148 = scmp.eq.s32.totalorder %s25, 0
      %p149 = por %p147, %p148
      %p150 = scmp.ne.s32.totalorder %s138, %s139
      %p151 = scmp.eq.s32.totalorder %s26, 5
      %p152 = por %p150, %p151
      %p154 = scmp.ne.s32.totalorder %s139, %s153
      %p155 = scmp.eq.s32.totalorder %s26, 0
      %p156 = por %p154, %p155
      %s157 = ssub.s32 %s27, %s39
      %p158 = scmp.eq.s32.totalorder %s157, 0
      %s160 = sadd.s32 %s159, 1
      %s161 = scalar_select %p158, %s159, %s160
      %p164 = pneg %p158
      %p165 = scmp.eq.s32.totalorder %s20, 5
      %p166 = por %p164, %p165
      %p167 = scmp.ne.s32.totalorder %s159, %s162
      %p168 = scmp.eq.s32.totalorder %s20, 0
      %p169 = por %p167, %p168
      %p170 = scmp.ne.s32.totalorder %s159, %s162
      %p171 = scmp.eq.s32.totalorder %s25, 5
      %p172 = por %p170, %p171
      %p173 = scmp.ne.s32.totalorder %s162, %s163
      %p174 = scmp.eq.s32.totalorder %s25, 0
      %p175 = por %p173, %p174
      %p176 = scmp.ne.s32.totalorder %s162, %s163
      %p177 = scmp.eq.s32.totalorder %s26, 5
      %p178 = por %p176, %p177
      %p180 = scmp.ne.s32.totalorder %s163, %s179
      %p181 = scmp.eq.s32.totalorder %s26, 0
      %p182 = por %p180, %p181
      %p183 = scmp.le.s32.totalorder 1, %s20
      %p184 = scmp.lt.s32.totalorder %s20, 7
      %p185 = pnand %p183, %p184
      %p186 = pneg %p185
      // Predicated region
      $region9: #{tpu_custom_call.1} parent=5 // pred_check
        _
      $region10: #{tpu_custom_call.1} parent=5 // pred_check_branch
        %188 = sbr.rel (%p185) target = $region12
      $region11: #{tpu_custom_call.1} parent=5 // pred_region
        %s189 = ssub.s32 %s20, 1
        // Predicated region
        $region13: #{tpu_custom_call.1} parent=11 // pred_check
          %p190 = pneg %p107
        $region14: #{tpu_custom_call.1} parent=11 // pred_check_branch
          %192 = sbr.rel (%p190) target = $region16
        $region15: #{tpu_custom_call.1} parent=11 // pred_region
          _
        $region16: #{tpu_custom_call.1} parent=11 // pred_fallthru
          _
        // Predicated region
        $region17: #{tpu_custom_call.1} parent=11 // pred_check
          %p193 = pneg %p128
        $region18: #{tpu_custom_call.1} parent=11 // pred_check_branch
          %195 = sbr.rel (%p193) target = $region20
        $region19: #{tpu_custom_call.1} parent=11 // pred_region
          %s197 = ssub.s32 1024, 1024
          %198 = vsyncadd [#allocation7], %s197
          %s199 = sshll.u32 [#allocation8], 4
          %s200 = int_to_ptr.vmem [resolvable:$true] %s199
          %205 = dma.hbm_to_vmem [thread:$0]  %s3, 1024, %s200, [#allocation7], 64, 64, 4
        $region20: #{tpu_custom_call.1} parent=11 // pred_fallthru
          _
        // Predicated region
        $region21: #{tpu_custom_call.1} parent=11 // pred_check
          %p206 = pneg %p149
        $region22: #{tpu_custom_call.1} parent=11 // pred_check_branch
          %208 = sbr.rel (%p206) target = $region24
        $region23: #{tpu_custom_call.1} parent=11 // pred_region
          _
        $region24: #{tpu_custom_call.1} parent=11 // pred_fallthru
          _
      $region12: #{tpu_custom_call.1} parent=5 // pred_fallthru
        _
      %p209 = scmp.lt.s32.totalorder %s20, 6
      // Predicated region
      $region25: #{tpu_custom_call.1} parent=5 // pred_check
        %p210 = pneg %p209
      $region26: #{tpu_custom_call.1} parent=5 // pred_check_branch
        %212 = sbr.rel (%p210) target = $region28
      $region27: #{tpu_custom_call.1} parent=5 // pred_region
        // Predicated region
        $region29: #{tpu_custom_call.1} parent=27 // pred_check
          %p213 = pneg %p54
        $region30: #{tpu_custom_call.1} parent=27 // pred_check_branch
          %215 = sbr.rel (%p213) target = $region32
        $region31: #{tpu_custom_call.1} parent=27 // pred_region
          %s216 = sand.u32 %s44, 1
          %s217 = scalar_lea.sflag [#allocation4], %s216
          %s218 = sand.u32 %s44, 1
          %s219 = smul.addr %s218, 16
          %s220 = scalar_lea.vmem [#allocation3], %s219
          %s221 = smul.u32 4, %s27
          %s223 = ssub.s32 256, 256
          %224 = vsyncadd %s217, %s223
          %s225 = smul.addr %s221, 3
          %s226 = sadd.s32 %s28, %s225
          %s227 = smul.addr %s226, 64
          %s228 = scalar_lea.hbm %s0, %s227
          %s229 = sshll.u32 %s220, 4
          %s230 = int_to_ptr.vmem [resolvable:$true] %s229
          %235 = dma.hbm_to_vmem [thread:$0]  %s228, 256, %s230, %s217, 192, 64, 4
        $region32: #{tpu_custom_call.1} parent=27 // pred_fallthru
          _
        // Predicated region
        $region33: #{tpu_custom_call.1} parent=27 // pred_check
          %p236 = pneg %p80
        $region34: #{tpu_custom_call.1} parent=27 // pred_check_branch
          %238 = sbr.rel (%p236) target = $region36
        $region35: #{tpu_custom_call.1} parent=27 // pred_region
          %s239 = sand.u32 %s20, 1
          %s240 = scalar_lea.sflag [#allocation7], %s239
          %s241 = sand.u32 %s70, 1
          %s242 = smul.addr %s241, 64
          %s243 = scalar_lea.vmem [#allocation6], %s242
          %s244 = smul.u32 16, %s28
          %s246 = ssub.s32 1024, 1024
          %247 = vsyncadd %s240, %s246
          %s248 = smul.addr %s244, 64
          %s249 = scalar_lea.hbm %s1, %s248
          %s250 = sshll.u32 %s243, 4
          %s251 = int_to_ptr.vmem [resolvable:$true] %s250
          %256 = dma.hbm_to_vmem [thread:$0]  %s249, 1024, %s251, %s240, 64, 64, 4
        $region36: #{tpu_custom_call.1} parent=27 // pred_fallthru
          _
      $region28: #{tpu_custom_call.1} parent=5 // pred_fallthru
        _
      %p257 = scmp.le.s32.totalorder 1, %s20
      %p258 = scmp.lt.s32.totalorder %s20, 7
      %p259 = pnand %p257, %p258
      %p260 = pneg %p259
      // Predicated region
      $region37: #{tpu_custom_call.1} parent=5 // pred_check
        _
      $region38: #{tpu_custom_call.1} parent=5 // pred_check_branch
        %262 = sbr.rel (%p259) target = $region40
      $region39: #{tpu_custom_call.1} parent=5 // pred_region
        %s263 = ssub.s32 %s20, 1
        %s264 = sand.u32 %s47, 1
        %s265 = scalar_lea.sflag [#allocation4], %s264
        %s266 = sand.u32 %s47, 1
        %s267 = smul.addr %s266, 16
        %s268 = scalar_lea.vmem [#allocation3], %s267
        // Predicated region
        $region41: #{tpu_custom_call.1} parent=39 // pred_check
          %p269 = pneg %p60
        $region42: #{tpu_custom_call.1} parent=39 // pred_check_branch
          %271 = sbr.rel (%p269) target = $region44
        $region43: #{tpu_custom_call.1} parent=39 // pred_region
          %272 = dma.done %s265, 256
        $region44: #{tpu_custom_call.1} parent=39 // pred_fallthru
          _
        %s273 = sand.u32 %s25, 1
        %s274 = scalar_lea.sflag [#allocation7], %s273
        %s275 = sand.u32 %s73, 1
        %s276 = smul.addr %s275, 64
        %s277 = scalar_lea.vmem [#allocation6], %s276
        // Predicated region
        $region45: #{tpu_custom_call.1} parent=39 // pred_check
          %p278 = pneg %p86
        $region46: #{tpu_custom_call.1} parent=39 // pred_check_branch
          %280 = sbr.rel (%p278) target = $region48
        $region47: #{tpu_custom_call.1} parent=39 // pred_region
          %281 = dma.done %s274, 1024
        $region48: #{tpu_custom_call.1} parent=39 // pred_fallthru
          _
        // Predicated region
        $region49: #{tpu_custom_call.1} parent=39 // pred_check
          %p282 = pneg %p128
        $region50: #{tpu_custom_call.1} parent=39 // pred_check_branch
          %284 = sbr.rel (%p282) target = $region52
        $region51: #{tpu_custom_call.1} parent=39 // pred_region
          %285 = dma.done [#allocation7], 1024
        $region52: #{tpu_custom_call.1} parent=39 // pred_fallthru
          _
        %s286 = sand.u32 %s47, 1
        %s287 = scalar_lea.sflag [#allocation4], %s286
        %s288 = sand.u32 %s47, 1
        %s289 = smul.addr %s288, 16
        %s290 = scalar_lea.vmem [#allocation3], %s289
        %p291 = pneg %p60
        %p292 = pneg %p57
        %s293 = sand.u32 %s25, 1
        %s294 = scalar_lea.sflag [#allocation7], %s293
        %s295 = sand.u32 %s73, 1
        %s296 = smul.addr %s295, 64
        %s297 = scalar_lea.vmem [#allocation6], %s296
        %p298 = pneg %p86
        %p299 = pneg %p83
        %p300 = pneg %p107
        %p301 = pneg %p104
        %p302 = pneg %p128
        %p303 = pneg %p125
        %p304 = pneg %p149
        %p305 = pneg %p146
        %p306 = pneg %p175
        %p307 = pneg %p172
        %s308 = sand.u32 %s162, 1
        %s309 = scalar_lea.sflag [#allocation5], %s308
        %s310 = sand.u32 %s162, 1
        %s311 = smul.addr %s310, 16
        %s312 = scalar_lea.vmem [#allocation9], %s311
        %s313 = smul.u32 4, %s29
        %s314 = smul.u32 16, %s30
        %s315 = smul.u32 4, %s29
        %p317 = scmp.eq.s32.totalorder %s30, 0
        // Predicated region
        $region53: #{tpu_custom_call.1} parent=39 // pred_check
          %p318 = pneg %p317
        $region54: #{tpu_custom_call.1} parent=39 // pred_check_branch
          %320 = sbr.rel (%p318) target = $region56
        $region55: #{tpu_custom_call.1} parent=39 // pred_region
          %321 = vst [vmem:[#allocation2] sm:$0xff] 0.0
          %322 = vst [vmem:[#allocation2 + $0x8] sm:$0xff] 0.0
          %323 = vst [vmem:[#allocation2 + $0x10] sm:$0xff] 0.0
          %324 = vst [vmem:[#allocation2 + $0x18] sm:$0xff] 0.0
        $region56: #{tpu_custom_call.1} parent=39 // pred_fallthru
          _
        %v325 = vld [vmem:[#allocation2] sm:$0xff]
        %v326 = vld [vmem:[#allocation2 + $0x8] sm:$0xff]
        %v327 = vld [vmem:[#allocation2 + $0x10] sm:$0xff]
        %v328 = vld [vmem:[#allocation2 + $0x18] sm:$0xff]
        %v329 = vld [vmem:[%s268] sm:$0xf]
        %v330 = vld [vmem:[%s268 + $0x4] sm:$0xf]
        %v331 = vld [vmem:[%s268 + $0x8] sm:$0xf]
        %v332 = vld [vmem:[%s268 + $0xc] sm:$0xf]
        %v333 = vld [vmem:[%s277] sm:$0xf]
        %v334 = vld [vmem:[%s277 + $0x4] sm:$0xf]
        %v335 = vld [vmem:[%s277 + $0x8] sm:$0xf]
        %v336 = vld [vmem:[%s277 + $0xc] sm:$0xf]
        %v337 = vld [vmem:[%s277 + $0x10] sm:$0xf]
        %v338 = vld [vmem:[%s277 + $0x14] sm:$0xf]
        %v339 = vld [vmem:[%s277 + $0x18] sm:$0xf]
        %v340 = vld [vmem:[%s277 + $0x1c] sm:$0xf]
        %v341 = vld [vmem:[%s277 + $0x20] sm:$0xf]
        %v342 = vld [vmem:[%s277 + $0x24] sm:$0xf]
        %v343 = vld [vmem:[%s277 + $0x28] sm:$0xf]
        %v344 = vld [vmem:[%s277 + $0x2c] sm:$0xf]
        %v345 = vld [vmem:[%s277 + $0x30] sm:$0xf]
        %v346 = vld [vmem:[%s277 + $0x34] sm:$0xf]
        %v347 = vld [vmem:[%s277 + $0x38] sm:$0xf]
        %v348 = vld [vmem:[%s277 + $0x3c] sm:$0xf]
        %v353 = vunpack.c.l.b16 %v329
        %v354 = vunpack.c.l.b16 %v330
        %v355 = vunpack.c.l.b16 %v331
        %v356 = vunpack.c.l.b16 %v332
        %v357 = vpack.c.b16 %v354, %v353
        %v358 = vpack.c.b16 %v356, %v355
        %v377 = vunpack.c.l.b16 %v333
        %v378 = vunpack.c.l.b16 %v334
        %v379 = vunpack.c.l.b16 %v335
        %v380 = vunpack.c.l.b16 %v336
        %v381 = vunpack.c.l.b16 %v337
        %v382 = vunpack.c.l.b16 %v338
        %v383 = vunpack.c.l.b16 %v339
        %v384 = vunpack.c.l.b16 %v340
        %v385 = vunpack.c.l.b16 %v341
        %v386 = vunpack.c.l.b16 %v342
        %v387 = vunpack.c.l.b16 %v343
        %v388 = vunpack.c.l.b16 %v344
        %v389 = vunpack.c.l.b16 %v345
        %v390 = vunpack.c.l.b16 %v346
        %v391 = vunpack.c.l.b16 %v347
        %v392 = vunpack.c.l.b16 %v348
        %v393 = vpack.c.b16 %v378, %v377
        %v394 = vpack.c.b16 %v380, %v379
        %v395 = vpack.c.b16 %v382, %v381
        %v396 = vpack.c.b16 %v384, %v383
        %v397 = vpack.c.b16 %v386, %v385
        %v398 = vpack.c.b16 %v388, %v387
        %v399 = vpack.c.b16 %v390, %v389
        %v400 = vpack.c.b16 %v392, %v391
        %409 = vmatprep.subr.bf16.mxu0 0
        %410 = vmatpush1.bf16.msra.mxu0 %v393
        %411 = vmatprep.subr.bf16.mxu0 0
        %412 = vmatpush1.bf16.msra.mxu0 %v394
        %413 = vmatprep.subr.bf16.mxu0 0
        %414 = vmatpush1.bf16.msra.mxu0 %v395
        %415 = vmatprep.subr.bf16.mxu0 0
        %416 = vmatpush1.bf16.msra.mxu0 %v396
        %417 = vmatprep.subr.bf16.mxu0 0
        %418 = vmatpush1.bf16.msra.mxu0 %v397
        %419 = vmatprep.subr.bf16.mxu0 0
        %420 = vmatpush1.bf16.msra.mxu0 %v398
        %421 = vmatprep.subr.bf16.mxu0 0
        %422 = vmatpush1.bf16.msra.mxu0 %v399
        %423 = vmatprep.subr.bf16.mxu0 0
        %424 = vmatpush1.bf16.msra.mxu0 %v400
        %425 = vmatprep.subr.bf16.mxu0 0
        %426 = vmatpush1.bf16.msra.mxu0 0
        %427 = vmatprep.subr.bf16.mxu0 0
        %428 = vmatpush1.bf16.msra.mxu0 0
        %429 = vmatprep.subr.bf16.mxu0 0
        %430 = vmatpush1.bf16.msra.mxu0 0
        %431 = vmatprep.subr.bf16.mxu0 0
        %432 = vmatpush1.bf16.msra.mxu0 0
        %433 = vmatprep.subr.bf16.mxu0 0
        %434 = vmatpush1.bf16.msra.mxu0 0
        %435 = vmatprep.subr.bf16.mxu0 0
        %436 = vmatpush1.bf16.msra.mxu0 0
        %437 = vmatprep.subr.bf16.mxu0 0
        %438 = vmatpush1.bf16.msra.mxu0 0
        %439 = vmatprep.subr.bf16.mxu0 0
        %440 = vmatpush1.bf16.msra.mxu0 0
        %441 = vmatprep.mubr.bf16.mxu0 0
        %442 = vmatmul.mubr.bf16.gmra.mrb[0].mxu0 %v357
        %v443 = vpop.f32.mrb[0].mxu0
        %v444 = vadd.f32 0.0, %v443
        %v445 = vpop.f32.mrb[0].mxu0
        %v446 = vpop.f32.mrb[0].mxu0
        %v447 = vadd.f32 0.0, %v446
        %v448 = vpop.f32.mrb[0].mxu0
        %449 = vmatprep.mubr.bf16.mxu0 0
        %450 = vmatmul.mubr.bf16.gmra.mrb[0].mxu0 %v358
        %v451 = vpop.f32.mrb[0].mxu0
        %v452 = vadd.f32 0.0, %v451
        %v453 = vpop.f32.mrb[0].mxu0
        %v454 = vpop.f32.mrb[0].mxu0
        %v455 = vadd.f32 0.0, %v454
        %v456 = vpop.f32.mrb[0].mxu0
        %457 = vdwg.mxu0
        %v458 = vadd.f32 %v325, %v444
        %v459 = vadd.f32 %v326, %v447
        %v460 = vadd.f32 %v327, %v452
        %v461 = vadd.f32 %v328, %v455
        %462 = vst [vmem:[#allocation2] sm:$0xff] %v458
        %463 = vst [vmem:[#allocation2 + $0x8] sm:$0xff] %v459
        %464 = vst [vmem:[#allocation2 + $0x10] sm:$0xff] %v460
        %465 = vst [vmem:[#allocation2 + $0x18] sm:$0xff] %v461
        %p466 = scmp.eq.s32.totalorder %s30, 2
        // Predicated region
        $region57: #{tpu_custom_call.1} parent=39 // pred_check
          %p467 = pneg %p466
        $region58: #{tpu_custom_call.1} parent=39 // pred_check_branch
          %469 = sbr.rel (%p467) target = $region60
        $region59: #{tpu_custom_call.1} parent=39 // pred_region
          %v470 = vld [vmem:[#allocation2] sm:$0xff]
          %v471 = vld [vmem:[#allocation2 + $0x8] sm:$0xff]
          %v472 = vld [vmem:[#allocation2 + $0x10] sm:$0xff]
          %v473 = vld [vmem:[#allocation2 + $0x18] sm:$0xff]
          %v474 = vmul.f32 %v470, 0.0625
          %v475 = vmul.f32 %v471, 0.0625
          %v476 = vmul.f32 %v472, 0.0625
          %v477 = vmul.f32 %v473, 0.0625
          %v478 = vld [vmem:[%s2] sm:$0x1]
          %v480 = vlaneseq
          %v481 = vshrl.u32 %v480, 7
          %v482 = vsub.s32 0, %v481
          %v483 = vrot.slane %v478, %v482
          %v485 = vadd.f32 %v474, %v483
          %v486 = vadd.f32 %v475, %v483
          %v487 = vadd.f32 %v476, %v483
          %v488 = vadd.f32 %v477, %v483
          %v489 = vmax.f32 %v485, 0.0
          %v490 = vmax.f32 %v486, 0.0
          %v491 = vmax.f32 %v487, 0.0
          %v492 = vmax.f32 %v488, 0.0
          %v493 = vpack.c.bf16 %v490, %v489
          %v494 = vpack.c.bf16 %v492, %v491
          %v495 = vld [vmem:[#allocation8] sm:$0xf]
          %v496 = vld [vmem:[#allocation8 + $0x4] sm:$0xf]
          %v497 = vld [vmem:[#allocation8 + $0x8] sm:$0xf]
          %v498 = vld [vmem:[#allocation8 + $0xc] sm:$0xf]
          %v499 = vld [vmem:[#allocation8 + $0x10] sm:$0xf]
          %v500 = vld [vmem:[#allocation8 + $0x14] sm:$0xf]
          %v501 = vld [vmem:[#allocation8 + $0x18] sm:$0xf]
          %v502 = vld [vmem:[#allocation8 + $0x1c] sm:$0xf]
          %v503 = vld [vmem:[#allocation8 + $0x20] sm:$0xf]
          %v504 = vld [vmem:[#allocation8 + $0x24] sm:$0xf]
          %v505 = vld [vmem:[#allocation8 + $0x28] sm:$0xf]
          %v506 = vld [vmem:[#allocation8 + $0x2c] sm:$0xf]
          %v507 = vld [vmem:[#allocation8 + $0x30] sm:$0xf]
          %v508 = vld [vmem:[#allocation8 + $0x34] sm:$0xf]
          %v509 = vld [vmem:[#allocation8 + $0x38] sm:$0xf]
          %v510 = vld [vmem:[#allocation8 + $0x3c] sm:$0xf]
          %v511 = vld [vmem:[%s4] sm:$0x1]
          %v513 = vlaneseq
          %v514 = vshrl.u32 %v513, 7
          %v515 = vsub.s32 0, %v514
          %v516 = vrot.slane %v511, %v515
          %v534 = vunpack.c.l.b16 %v495
          %v535 = vunpack.c.l.b16 %v496
          %v536 = vunpack.c.l.b16 %v497
          %v537 = vunpack.c.l.b16 %v498
          %v538 = vunpack.c.l.b16 %v499
          %v539 = vunpack.c.l.b16 %v500
          %v540 = vunpack.c.l.b16 %v501
          %v541 = vunpack.c.l.b16 %v502
          %v542 = vunpack.c.l.b16 %v503
          %v543 = vunpack.c.l.b16 %v504
          %v544 = vunpack.c.l.b16 %v505
          %v545 = vunpack.c.l.b16 %v506
          %v546 = vunpack.c.l.b16 %v507
          %v547 = vunpack.c.l.b16 %v508
          %v548 = vunpack.c.l.b16 %v509
          %v549 = vunpack.c.l.b16 %v510
          %v550 = vpack.c.b16 %v535, %v534
          %v551 = vpack.c.b16 %v537, %v536
          %v552 = vpack.c.b16 %v539, %v538
          %v553 = vpack.c.b16 %v541, %v540
          %v554 = vpack.c.b16 %v543, %v542
          %v555 = vpack.c.b16 %v545, %v544
          %v556 = vpack.c.b16 %v547, %v546
          %v557 = vpack.c.b16 %v549, %v548
          %566 = vmatprep.subr.bf16.mxu0 0
          %567 = vmatpush1.bf16.msra.mxu0 %v550
          %568 = vmatprep.subr.bf16.mxu0 0
          %569 = vmatpush1.bf16.msra.mxu0 %v551
          %570 = vmatprep.subr.bf16.mxu0 0
          %571 = vmatpush1.bf16.msra.mxu0 %v552
          %572 = vmatprep.subr.bf16.mxu0 0
          %573 = vmatpush1.bf16.msra.mxu0 %v553
          %574 = vmatprep.subr.bf16.mxu0 0
          %575 = vmatpush1.bf16.msra.mxu0 %v554
          %576 = vmatprep.subr.bf16.mxu0 0
          %577 = vmatpush1.bf16.msra.mxu0 %v555
          %578 = vmatprep.subr.bf16.mxu0 0
          %579 = vmatpush1.bf16.msra.mxu0 %v556
          %580 = vmatprep.subr.bf16.mxu0 0
          %581 = vmatpush1.bf16.msra.mxu0 %v557
          %582 = vmatprep.subr.bf16.mxu0 0
          %583 = vmatpush1.bf16.msra.mxu0 0
          %584 = vmatprep.subr.bf16.mxu0 0
          %585 = vmatpush1.bf16.msra.mxu0 0
          %586 = vmatprep.subr.bf16.mxu0 0
          %587 = vmatpush1.bf16.msra.mxu0 0
          %588 = vmatprep.subr.bf16.mxu0 0
          %589 = vmatpush1.bf16.msra.mxu0 0
          %590 = vmatprep.subr.bf16.mxu0 0
          %591 = vmatpush1.bf16.msra.mxu0 0
          %592 = vmatprep.subr.bf16.mxu0 0
          %593 = vmatpush1.bf16.msra.mxu0 0
          %594 = vmatprep.subr.bf16.mxu0 0
          %595 = vmatpush1.bf16.msra.mxu0 0
          %596 = vmatprep.subr.bf16.mxu0 0
          %597 = vmatpush1.bf16.msra.mxu0 0
          %598 = vmatprep.mubr.bf16.mxu0 0
          %599 = vmatmul.mubr.bf16.gmra.mrb[0].mxu0 %v493
          %v600 = vpop.f32.mrb[0].mxu0
          %v601 = vadd.f32 %v516, %v600
          %v602 = vpop.f32.mrb[0].mxu0
          %v603 = vpop.f32.mrb[0].mxu0
          %v604 = vadd.f32 %v516, %v603
          %v605 = vpop.f32.mrb[0].mxu0
          %606 = vmatprep.mubr.bf16.mxu0 0
          %607 = vmatmul.mubr.bf16.gmra.mrb[0].mxu0 %v494
          %v608 = vpop.f32.mrb[0].mxu0
          %v609 = vadd.f32 %v516, %v608
          %v610 = vpop.f32.mrb[0].mxu0
          %v611 = vpop.f32.mrb[0].mxu0
          %v612 = vadd.f32 %v516, %v611
          %v613 = vpop.f32.mrb[0].mxu0
          %614 = vdwg.mxu0
          %v615 = vpack.c.bf16 %v604, %v601
          %v616 = vpack.c.bf16 %v612, %v609
          %v619 = vunpack.c.l.b16 %v615
          %v620 = vunpack.c.h.b16 %v615
          %v621 = vunpack.c.l.b16 %v616
          %v622 = vunpack.c.h.b16 %v616
          %v623 = vpack.c.b16 %v619, %v619
          %v624 = vpack.c.b16 %v620, %v620
          %v625 = vpack.c.b16 %v621, %v621
          %v626 = vpack.c.b16 %v622, %v622
          %631 = vst [vmem:[%s312] sm:$0xf] %v623
          %632 = vst [vmem:[%s312 + $0x4] sm:$0xf] %v624
          %633 = vst [vmem:[%s312 + $0x8] sm:$0xf] %v625
          %634 = vst [vmem:[%s312 + $0xc] sm:$0xf] %v626
        $region60: #{tpu_custom_call.1} parent=39 // pred_fallthru
          _
        %s635 = sand.u32 %s162, 1
        %s636 = scalar_lea.sflag [#allocation5], %s635
        %s637 = sand.u32 %s162, 1
        %s638 = smul.addr %s637, 16
        %s639 = scalar_lea.vmem [#allocation9], %s638
        // Predicated region
        $region61: #{tpu_custom_call.1} parent=39 // pred_check
          %p640 = pneg %p172
        $region62: #{tpu_custom_call.1} parent=39 // pred_check_branch
          %642 = sbr.rel (%p640) target = $region64
        $region63: #{tpu_custom_call.1} parent=39 // pred_region
          %s643 = smul.u32 4, %s29
          %s645 = ssub.s32 256, 256
          %646 = vsyncadd %s636, %s645
          %s647 = smul.addr %s643, 64
          %s648 = scalar_lea.hbm %s5, %s647
          %s649 = sshll.u32 %s639, 4
          %s650 = int_to_ptr.vmem [resolvable:$true] %s649
          %655 = dma.vmem_to_hbm [thread:$0]  %s650, 256, %s648, %s636, 64, 64, 4
        $region64: #{tpu_custom_call.1} parent=39 // pred_fallthru
          _
      $region40: #{tpu_custom_call.1} parent=5 // pred_fallthru
        _
      %p656 = scmp.le.s32.totalorder 2, %s20
      // Predicated region
      $region65: #{tpu_custom_call.1} parent=5 // pred_check
        %p657 = pneg %p656
      $region66: #{tpu_custom_call.1} parent=5 // pred_check_branch
        %659 = sbr.rel (%p657) target = $region68
      $region67: #{tpu_custom_call.1} parent=5 // pred_region
        %s660 = ssub.s32 %s20, 2
        // Predicated region
        $region69: #{tpu_custom_call.1} parent=67 // pred_check
          %p661 = pneg %p178
        $region70: #{tpu_custom_call.1} parent=67 // pred_check_branch
          %663 = sbr.rel (%p661) target = $region72
        $region71: #{tpu_custom_call.1} parent=67 // pred_region
          %s664 = sand.u32 %s163, 1
          %s665 = scalar_lea.sflag [#allocation5], %s664
          %s666 = sand.u32 %s163, 1
          %s667 = smul.addr %s666, 16
          %s668 = scalar_lea.vmem [#allocation9], %s667
          %669 = dma.done %s665, 256
        $region72: #{tpu_custom_call.1} parent=67 // pred_fallthru
          _
      $region68: #{tpu_custom_call.1} parent=5 // pred_fallthru
        _
    $region6: #{tpu_custom_call.1} parent=1 // loop_footer
      %s24 = sadd.s32 1, %s20
    $region7: #{tpu_custom_call.1} parent=1 // loop_footer_branch
      %19 = sbr.rel target = $region3
    $region8: #{tpu_custom_call.1} parent=1 // loop_exit
      _
    %670 = vsyncpa [#allocation4], 1
    %s671 = scalar_lea.sflag [#allocation4], 1
    %672 = vsyncpa %s671, 1
    %673 = vsyncpa [#allocation7], 1
    %s674 = scalar_lea.sflag [#allocation7], 1
    %675 = vsyncpa %s674, 1
    %676 = vsyncpa [#allocation5], 1
    %s677 = scalar_lea.sflag [#allocation5], 1
    %678 = vsyncpa %s677, 1

</llo_original>
